<compile_context>
chip_gen: v7x
topology: tpu7x:2x2x1
jax: 0.10.0
libtpu: 0.0.40
codegen_flags: <defaults>
</compile_context>

<pallas_src>
import jax
import jax.numpy as jnp
from jax.experimental import pallas as pl
from jax.experimental.pallas import tpu as pltpu


def mlp_kernel(x_ref, w1_ref, b1_ref, w2_ref, b2_ref, o_ref, acc_ref):
    k = pl.program_id(1)

    @pl.when(k == 0)
    def _():
        acc_ref[...] = jnp.zeros_like(acc_ref)

    # (tile_b, d_in) @ (d_in, tile_h) on the MXU, f32 accumulation.
    h = jnp.dot(x_ref[...], w1_ref[...], preferred_element_type=jnp.float32)
    h = jnp.maximum(h + b1_ref[...].astype(jnp.float32), 0.0)  # bias + ReLU (VPU, f32)
    # hidden dropout: identity at inference time
    acc_ref[...] += jnp.dot(h.astype(w2_ref.dtype), w2_ref[...],
                            preferred_element_type=jnp.float32)

    @pl.when(k == pl.num_programs(1) - 1)
    def _():
        o_ref[...] = (acc_ref[...] + b2_ref[...].astype(jnp.float32)).astype(o_ref.dtype)


def _vmem_capacity_bytes():
    """Per-core VMEM capacity; conservative fallback if the query fails."""
    try:
        cap = getattr(pltpu.get_tpu_info(), "vmem_capacity_bytes", None)
        if cap:
            return int(cap)
    except Exception:
        pass
    return 64 << 20  # v7x per-TensorCore VMEM (smallest of the three generations)


def _vmem_bytes(tile_b, d_in, tile_h, d_out, x_isz, w_isz, out_isz, w_bufs):
    """Per-step VMEM estimate with explicit buffer counts."""
    est = 2 * tile_b * d_in * x_isz          # x tiles (double-buffered batch stream)
    est += w_bufs * d_in * tile_h * w_isz    # W1 chunks
    est += w_bufs * tile_h * 4               # b1 chunks
    est += w_bufs * tile_h * d_out * w_isz   # W2 chunks
    est += 1 * d_out * 4                     # b2 (single-buffered, constant)
    est += 2 * tile_b * d_out * out_isz      # out tiles (double-buffered)
    est += tile_b * d_out * 4                # f32 accumulator scratch
    est += tile_b * tile_h * (4 + w_isz)     # live f32 intermediate + low-prec copy
    return est


def _pick_tile_h(hidden):
    # Prefer 512/256-multiples (fills v6e/v7x 256-wide MXU) that divide H exactly
    # so the reduction axis never reads padded (garbage) weight columns.
    for cand in (512, 256, 128):
        if hidden > cand and hidden % cand == 0:
            return cand
    return hidden


def _pick_tile_b(B, d_in, tile_h, d_out, x_isz, w_isz, out_isz, w_bufs, budget):
    sub = 16 if x_isz < 4 else 8  # sublane packing: bf16 -> 16, f32 -> 8
    if B <= sub:
        return B
    hi = min((B // sub) * sub, 1024)
    # First pass: largest multiple of `sub` that divides B and fits the budget.
    for t in range(hi, sub - 1, -sub):
        if B % t == 0 and _vmem_bytes(t, d_in, tile_h, d_out,
                                      x_isz, w_isz, out_isz, w_bufs) <= budget:
            return t
    # Second pass: drop divisibility (padded/masked last block, still correct).
    for t in range(hi, sub - 1, -sub):
        if _vmem_bytes(t, d_in, tile_h, d_out, x_isz, w_isz, out_isz, w_bufs) <= budget:
            return t
    return sub


def _spec(shape, index_map, single_buffer=False):
    """BlockSpec; single-buffer constant-index operands when supported."""
    if single_buffer:
        try:
            return pl.BlockSpec(shape, index_map, pipeline_mode=pl.Buffered(1))
        except (TypeError, AttributeError):
            pass  # older jax: fall back to default double-buffering
    return pl.BlockSpec(shape, index_map)


def mlp_forward(x, w1, b1, w2, b2, *, tile_b=None, tile_h=None):
    """x: (B, D_in). w1: (D_in, H), w2: (H, D_out). Returns (B, D_out) in x.dtype."""
    B, d_in = x.shape
    hidden = w1.shape[1]
    d_out = w2.shape[1]
    out_dtype = x.dtype

    x_isz = jnp.dtype(x.dtype).itemsize
    w_isz = jnp.dtype(w1.dtype).itemsize
    out_isz = jnp.dtype(out_dtype).itemsize

    cap = _vmem_capacity_bytes()
    budget = int(0.80 * cap)

    if tile_h is None or hidden % tile_h != 0:
        tile_h = _pick_tile_h(hidden)
    tile_h = min(tile_h, hidden)
    grid_h = pl.cdiv(hidden, tile_h)
    w_bufs = 1 if grid_h == 1 else 2  # constant index_map -> no double buffer needed

    sub = 16 if x_isz < 4 else 8
    if tile_b is None:
        tile_b = _pick_tile_b(B, d_in, tile_h, d_out,
                              x_isz, w_isz, out_isz, w_bufs, budget)
        # v7x has 2 TensorCores: make sure the "parallel" batch axis has >= 2
        # (even) steps so both cores get work; one extra step is harmless on v5e/v6e.
        if pl.cdiv(B, tile_b) == 1 and B >= 128 and (B // 2) % sub == 0:
            tile_b = B // 2
    tile_b = min(tile_b, B)
    grid_b = pl.cdiv(B, tile_b)

    est = _vmem_bytes(tile_b, d_in, tile_h, d_out, x_isz, w_isz, out_isz, w_bufs)
    vmem_limit = min(int(0.90 * cap), max(2 * est + (4 << 20), 32 << 20))
    vmem_limit = int(max(vmem_limit, est + (2 << 20)))

    flops = 2 * B * d_in * hidden + 2 * B * hidden * d_out
    bytes_accessed = int(
        B * d_in * x_isz
        + grid_b * (d_in * hidden + hidden * d_out) * w_isz  # weights re-streamed per batch tile
        + (hidden + d_out) * 4
        + B * d_out * out_isz
    )

    grid_spec = pltpu.PrefetchScalarGridSpec(
        num_scalar_prefetch=0,
        grid=(grid_b, grid_h),
        in_specs=[
            _spec((tile_b, d_in), lambda i, k: (i, 0)),                # x: batch stream
            _spec((d_in, tile_h), lambda i, k: (0, k), w_bufs == 1),   # W1: H-chunk stream
            _spec((1, tile_h), lambda i, k: (0, k), w_bufs == 1),      # b1: H-chunk stream
            _spec((tile_h, d_out), lambda i, k: (k, 0), w_bufs == 1),  # W2: H-chunk stream
            _spec((1, d_out), lambda i, k: (0, 0), True),              # b2: resident, 1 buffer
        ],
        out_specs=_spec((tile_b, d_out), lambda i, k: (i, 0)),
        scratch_shapes=[pltpu.VMEM((tile_b, d_out), jnp.float32)],     # f32 accumulator
    )

    return pl.pallas_call(
        mlp_kernel,
        out_shape=jax.ShapeDtypeStruct((B, d_out), out_dtype),
        grid_spec=grid_spec,
        compiler_params=pltpu.CompilerParams(
            dimension_semantics=("parallel", "arbitrary"),
            vmem_limit_bytes=vmem_limit,
        ),
        cost_estimate=pl.CostEstimate(
            flops=flops, transcendentals=0, bytes_accessed=bytes_accessed),
    )(x, w1, b1, w2, b2)


def init_linear(key, in_features, out_features, w_dtype=jnp.float32):
    """PyTorch-style nn.Linear init: U(-1/sqrt(fan_in), 1/sqrt(fan_in)).
    Weight returned as (in_features, out_features); bias as (1, out_features) f32."""
    k_w, k_b = jax.random.split(key)
    bound = 1.0 / (in_features ** 0.5)
    w = jax.random.uniform(k_w, (in_features, out_features),
                           minval=-bound, maxval=bound, dtype=jnp.float32)
    b = jax.random.uniform(k_b, (1, out_features),
                           minval=-bound, maxval=bound, dtype=jnp.float32)
    return w.astype(w_dtype), b


if __name__ == "__main__":
    # Small, lane-dense demo shapes; exercises both grid axes:
    # hidden=1024 -> tile_h=512 (2 "arbitrary" H chunks), batch=256 -> tile_b=128
    # (2 "parallel" batch tiles, so both v7x TensorCores get work).
    batch, input_dim, hidden_dim, output_dim = 256, 128, 1024, 128

    key = jax.random.PRNGKey(0)
    k_x, k_l1, k_l2 = jax.random.split(key, 3)

    x = jax.random.normal(k_x, (batch, input_dim),
                          dtype=jnp.float32).astype(jnp.bfloat16)
    w1, b1 = init_linear(k_l1, input_dim, hidden_dim, w_dtype=jnp.bfloat16)
    w2, b2 = init_linear(k_l2, hidden_dim, output_dim, w_dtype=jnp.bfloat16)

    out = mlp_forward(x, w1, b1, w2, b2)
    out = jax.block_until_ready(out)

    # Reference mirroring the kernel numerics: bf16 MXU inputs, f32 accumulation,
    # f32 bias + ReLU, hidden rounded to bf16 before the second matmul.
    h_ref = jnp.maximum(
        jnp.dot(x, w1, preferred_element_type=jnp.float32) + b1, 0.0)
    h_ref = h_ref.astype(jnp.bfloat16)
    ref = jnp.dot(h_ref, w2, preferred_element_type=jnp.float32) + b2

    assert out.shape == (batch, output_dim)
    assert out.dtype == x.dtype  # bf16 output (matches a bf16 PyTorch MLP)
    assert jnp.allclose(out.astype(jnp.float32), ref, atol=2e-2, rtol=2e-2)

    print("KERNEL_OK")
</pallas_src>

<mosaic_0001>
module attributes {stable_mosaic.version = 11 : i64} {
  func.func @mlp_kernel(%arg0: i32, %arg1: i32, %arg2: memref<128x128xbf16, #tpu.memory_space<vmem>>, %arg3: memref<128x512xbf16, #tpu.memory_space<vmem>>, %arg4: memref<1x512xf32, #tpu.memory_space<vmem>>, %arg5: memref<512x128xbf16, #tpu.memory_space<vmem>>, %arg6: memref<1x128xf32, #tpu.memory_space<vmem>>, %arg7: memref<128x128xbf16, #tpu.memory_space<vmem>>, %arg8: memref<128x128xf32, #tpu.memory_space<vmem>>) attributes {dimension_semantics = [#tpu.dimension_semantics<parallel>, #tpu.dimension_semantics<arbitrary>], iteration_bounds = array<i64: 2, 2>, scalar_prefetch = 0 : i64, scratch_operands = 1 : i64, tpu.core_type = #tpu.core_type<tc>, window_params = [{transform_indices = @transform_0, window_bounds = array<i64: 128, 128>}, {transform_indices = @transform_1, window_bounds = array<i64: 128, 512>}, {transform_indices = @transform_2, window_bounds = array<i64: 1, 512>}, {transform_indices = @transform_3, window_bounds = array<i64: 512, 128>}, {pipeline_mode = #tpu.pipeline_mode<synchronous>, transform_indices = @transform_4, window_bounds = array<i64: 1, 128>}, {transform_indices = @transform_5, window_bounds = array<i64: 128, 128>}]} {
    %c0_i32 = arith.constant 0 : i32
    %0 = arith.cmpi eq, %arg1, %c0_i32 : i32
    %1 = arith.extui %0 : i1 to i32
    %c0_i32_0 = arith.constant 0 : i32
    %2 = arith.cmpi ne, %1, %c0_i32_0 : i32
    scf.if %2 {
      %cst_15 = arith.constant 0.000000e+00 : f32
      %20 = vector.broadcast %cst_15 : f32 to vector<128x128xf32>
      %c0_16 = arith.constant 0 : index
      %c0_17 = arith.constant 0 : index
      %21 = vector.load %arg8[%c0_16, %c0_17] : memref<128x128xf32, #tpu.memory_space<vmem>>, vector<128x128xf32>
      tpu.vector_store %arg8[%c0_16, %c0_17], %20 {strides = array<i32>} : memref<128x128xf32, #tpu.memory_space<vmem>>, vector<128x128xf32>,
    } else {
    }
    %c0 = arith.constant 0 : index
    %c0_1 = arith.constant 0 : index
    %3 = vector.load %arg2[%c0, %c0_1] : memref<128x128xbf16, #tpu.memory_space<vmem>>, vector<128x128xbf16>
    %c0_2 = arith.constant 0 : index
    %c0_3 = arith.constant 0 : index
    %4 = vector.load %arg3[%c0_2, %c0_3] : memref<128x512xbf16, #tpu.memory_space<vmem>>, vector<128x512xbf16>
    %cst = arith.constant dense<0.000000e+00> : vector<128x512xf32>
    %5 = tpu.matmul %3, %4, %cst {dimension_numbers = #tpu.dot_dimension_numbers<[1], [0], [0], [1], [0, 0, 1, 1], [], []>} : vector<128x128xbf16>, vector<128x512xbf16>, vector<128x512xf32> -> vector<128x512xf32>
    %c0_4 = arith.constant 0 : index
    %c0_5 = arith.constant 0 : index
    %6 = vector.load %arg4[%c0_4, %c0_5] : memref<1x512xf32, #tpu.memory_space<vmem>>, vector<1x512xf32>
    %7 = vector.broadcast %6 : vector<1x512xf32> to vector<128x512xf32>
    %8 = arith.addf %5, %7 : vector<128x512xf32>
    %cst_6 = arith.constant 0.000000e+00 : f32
    %9 = vector.broadcast %cst_6 : f32 to vector<128x512xf32>
    %10 = arith.maximumf %8, %9 : vector<128x512xf32>
    %c0_7 = arith.constant 0 : index
    %c0_8 = arith.constant 0 : index
    %11 = vector.load %arg8[%c0_7, %c0_8] : memref<128x128xf32, #tpu.memory_space<vmem>>, vector<128x128xf32>
    %12 = arith.truncf %10 : vector<128x512xf32> to vector<128x512xbf16>
    %c0_9 = arith.constant 0 : index
    %c0_10 = arith.constant 0 : index
    %13 = vector.load %arg5[%c0_9, %c0_10] : memref<512x128xbf16, #tpu.memory_space<vmem>>, vector<512x128xbf16>
    %cst_11 = arith.constant dense<0.000000e+00> : vector<128x128xf32>
    %14 = tpu.matmul %12, %13, %cst_11 {dimension_numbers = #tpu.dot_dimension_numbers<[1], [0], [0], [1], [0, 0, 1, 1], [], []>} : vector<128x512xbf16>, vector<512x128xbf16>, vector<128x128xf32> -> vector<128x128xf32>
    %15 = arith.addf %11, %14 : vector<128x128xf32>
    %c0_12 = arith.constant 0 : index
    %c0_13 = arith.constant 0 : index
    %16 = vector.load %arg8[%c0_12, %c0_13] : memref<128x128xf32, #tpu.memory_space<vmem>>, vector<128x128xf32>
    tpu.vector_store %arg8[%c0_12, %c0_13], %15 {strides = array<i32>} : memref<128x128xf32, #tpu.memory_space<vmem>>, vector<128x128xf32>,
    %c1_i32 = arith.constant 1 : i32
    %17 = arith.cmpi eq, %arg1, %c1_i32 : i32
    %18 = arith.extui %17 : i1 to i32
    %c0_i32_14 = arith.constant 0 : i32
    %19 = arith.cmpi ne, %18, %c0_i32_14 : i32
    scf.if %19 {
      %c0_15 = arith.constant 0 : index
      %c0_16 = arith.constant 0 : index
      %20 = vector.load %arg8[%c0_15, %c0_16] : memref<128x128xf32, #tpu.memory_space<vmem>>, vector<128x128xf32>
      %c0_17 = arith.constant 0 : index
      %c0_18 = arith.constant 0 : index
      %21 = vector.load %arg6[%c0_17, %c0_18] : memref<1x128xf32, #tpu.memory_space<vmem>>, vector<1x128xf32>
      %22 = vector.broadcast %21 : vector<1x128xf32> to vector<128x128xf32>
      %23 = arith.addf %20, %22 : vector<128x128xf32>
      %24 = arith.truncf %23 : vector<128x128xf32> to vector<128x128xbf16>
      %c0_19 = arith.constant 0 : index
      %c0_20 = arith.constant 0 : index
      %25 = vector.load %arg7[%c0_19, %c0_20] : memref<128x128xbf16, #tpu.memory_space<vmem>>, vector<128x128xbf16>
      tpu.vector_store %arg7[%c0_19, %c0_20], %24 {strides = array<i32>} : memref<128x128xbf16, #tpu.memory_space<vmem>>, vector<128x128xbf16>,
    } else {
    }
    return
  }
  func.func @transform_0(%arg0: i32, %arg1: i32) -> (i32, i32) {
    %c0_i32 = arith.constant 0 : i32
    %c0_i32_0 = arith.constant 0 : i32
    return %arg0, %c0_i32 : i32, i32
  }
  func.func @transform_1(%arg0: i32, %arg1: i32) -> (i32, i32) {
    %c0_i32 = arith.constant 0 : i32
    %c0_i32_0 = arith.constant 0 : i32
    return %c0_i32, %arg1 : i32, i32
  }
  func.func @transform_2(%arg0: i32, %arg1: i32) -> (i32, i32) {
    %c0_i32 = arith.constant 0 : i32
    %c0_i32_0 = arith.constant 0 : i32
    return %c0_i32, %arg1 : i32, i32
  }
  func.func @transform_3(%arg0: i32, %arg1: i32) -> (i32, i32) {
    %c0_i32 = arith.constant 0 : i32
    %c0_i32_0 = arith.constant 0 : i32
    return %arg1, %c0_i32 : i32, i32
  }
  func.func @transform_4(%arg0: i32, %arg1: i32) -> (i32, i32) {
    %c0_i32 = arith.constant 0 : i32
    %c0_i32_0 = arith.constant 0 : i32
    %c0_i32_1 = arith.constant 0 : i32
    return %c0_i32, %c0_i32_0 : i32, i32
  }
  func.func @transform_5(%arg0: i32, %arg1: i32) -> (i32, i32) {
    %c0_i32 = arith.constant 0 : i32
    %c0_i32_0 = arith.constant 0 : i32
    return %arg0, %c0_i32 : i32, i32
  }
}

</mosaic_0001>

<llo_original>
// kernel: tpu_custom_call.1
$region0: #{tpu_custom_call.1}
  #allocation0 [shape = 'u32[]', space=smem, size = 0x4, offset = 0x4, fixed_abs, tag = 'smem constant byte address 0x4 - core index']
  #allocation1 [shape = 'u32[144,128]{1,0:T(1,128)}', space=vmem, size = 0x12000, scoped, tag = 'internal scratch']
  #allocation2 [shape = 'f32[128,128]{1,0:T(8,128)}', space=vmem, size = 0x10000, scoped, tag = 'scratch operand']
  %s0 = inlined_call_operand.hbm [shape: bf16[256,128], index: 0, kind: input, shape index: {}]
  %s1 = inlined_call_operand.hbm [shape: bf16[128,1024], index: 1, kind: input, shape index: {}]
  %s2 = inlined_call_operand.hbm [shape: f32[1,1024], index: 2, kind: input, shape index: {}]
  %s3 = inlined_call_operand.hbm [shape: bf16[1024,128], index: 3, kind: input, shape index: {}]
  %s4 = inlined_call_operand.vmem [shape: f32[1,128], index: 4, kind: input, shape index: {}]
  %s5 = inlined_call_operand.hbm [shape: bf16[256,128], index: 5, kind: output, shape index: {}]
  %s6 = sld [smem:[#allocation0]]
  $region77: #{tpu_custom_call.1} parent=0
    _
  %s8 = ssub.s32 1, %s6
  %s9 = scalar_select 0, %s8, %s6
  $region1: #{tpu_custom_call.1} parent=0
    #allocation3 [shape = 'u8[65536]{0}', space=vmem, size = 0x10000, scoped, tag = 'input window, operand 0']
    #allocation4 [shape = 's32[2]{0}', space=sflag, size = 0x8, scoped, tag = 'scoped memory for tpu_custom_call.1']
    #allocation5 [shape = 's32[2]{0}', space=sflag, size = 0x8, scoped, tag = 'scoped memory for tpu_custom_call.1']
    #allocation6 [shape = 'u8[262144]{0}', space=vmem, size = 0x40000, scoped, tag = 'input window, operand 1']
    #allocation7 [shape = 's32[2]{0}', space=sflag, size = 0x8, scoped, tag = 'scoped memory for tpu_custom_call.1']
    #allocation8 [shape = 'u8[4096]{0}', space=vmem, size = 0x1000, scoped, tag = 'input window, operand 2']
    #allocation9 [shape = 'u8[262144]{0}', space=vmem, size = 0x40000, scoped, tag = 'input window, operand 3']
    #allocation10 [shape = 's32[2]{0}', space=sflag, size = 0x8, scoped, tag = 'scoped memory for tpu_custom_call.1']
    #allocation11 [shape = 'u8[65536]{0}', space=vmem, size = 0x10000, scoped, tag = 'output window, operand 0']
    %10 = vsyncpa [#allocation4], 0
    %s11 = scalar_lea.sflag [#allocation4], 1
    %12 = vsyncpa %s11, 0
    %13 = vsyncpa [#allocation7], 0
    %s14 = scalar_lea.sflag [#allocation7], 1
    %15 = vsyncpa %s14, 0
    %16 = vsyncpa [#allocation10], 0
    %s17 = scalar_lea.sflag [#allocation10], 1
    %18 = vsyncpa %s17, 0
    %19 = vsyncpa [#allocation5], 0
    %s20 = scalar_lea.sflag [#allocation5], 1
    %21 = vsyncpa %s20, 0
    loop: start=0, step=1, limit=6
    $region2: #{tpu_custom_call.1} parent=1 // loop_pre_header
      _
    $region3: #{tpu_custom_call.1} parent=1 // loop_header
      %s23 = sphi 0, %s27
      %p24 = scmp.ge.s32.totalorder %s23, 6
      %s30 = sphi 0, %s42
      %s31 = sphi 0, %s38
      %s32 = sphi 0, %s30
      %s33 = sphi 0, %s31
      %s34 = sphi 0, %s32
      %s35 = sphi 0, %s33
      %s45 = sphi 0, %s47
      %s48 = sphi 0, %s45
      %s49 = sphi 0, %s48
      %s65 = sphi 0, %s49
      %s71 = sphi 0, %s73
      %s74 = sphi 0, %s71
      %s75 = sphi 0, %s74
      %s91 = sphi 0, %s75
      %s97 = sphi 0, %s99
      %s100 = sphi 0, %s97
      %s101 = sphi 0, %s100
      %s117 = sphi 0, %s101
      %s123 = sphi 0, %s125
      %s126 = sphi 0, %s123
      %s127 = sphi 0, %s126
      %s143 = sphi 0, %s127
      %s147 = sphi 0, %s147
      %s149 = sphi 0, %s147
      %s150 = sphi 0, %s149
      %s164 = sphi 0, %s150
      %s170 = sphi 0, %s172
      %s173 = sphi 0, %s170
      %s174 = sphi 0, %s173
      %s190 = sphi 0, %s174
    $region4: #{tpu_custom_call.1} parent=1 // loop_header_branch
      %26 = sbr.rel (%p24) target = $region8
    $region5: #{tpu_custom_call.1} parent=1 // loop_body
      %s28 = ssub.s32 %s23, 1
      %s29 = ssub.s32 %s23, 2
      %s36 = sadd.s32 1, %s31
      %p37 = scmp.ge.s32.totalorder %s36, 2
      %s38 = scalar_select %p37, 0, %s36
      %s39 = sadd.s32 1, %s30
      %s40 = scalar_select %p37, %s39, %s30
      %p41 = scmp.ge.s32.totalorder %s40, 2
      %s42 = scalar_select %p41, 0, %s40
      %s43 = ssub.s32 %s30, %s42
      %p44 = scmp.eq.s32.totalorder %s43, 0
      %s46 = sadd.s32 %s45, 1
      %s47 = scalar_select %p44, %s45, %s46
      %p50 = pneg %p44
      %p51 = scmp.eq.s32.totalorder %s23, 3
      %p52 = por %p50, %p51
      %p53 = scmp.ne.s32.totalorder %s45, %s48
      %p54 = scmp.eq.s32.totalorder %s23, 0
      %p55 = por %p53, %p54
      %p56 = scmp.ne.s32.totalorder %s45, %s48
      %p57 = scmp.eq.s32.totalorder %s28, 3
      %p58 = por %p56, %p57
      %p59 = scmp.ne.s32.totalorder %s48, %s49
      %p60 = scmp.eq.s32.totalorder %s28, 0
      %p61 = por %p59, %p60
      %p62 = scmp.ne.s32.totalorder %s48, %s49
      %p63 = scmp.eq.s32.totalorder %s29, 3
      %p64 = por %p62, %p63
      %p66 = scmp.ne.s32.totalorder %s49, %s65
      %p67 = scmp.eq.s32.totalorder %s29, 0
      %p68 = por %p66, %p67
      %s69 = ssub.s32 %s31, %s38
      %p70 = scmp.eq.s32.totalorder %s69, 0
      %s72 = sadd.s32 %s71, 1
      %s73 = scalar_select %p70, %s71, %s72
      %p76 = pneg %p70
      %p77 = scmp.eq.s32.totalorder %s23, 3
      %p78 = por %p76, %p77
      %p79 = scmp.ne.s32.totalorder %s71, %s74
      %p80 = scmp.eq.s32.totalorder %s23, 0
      %p81 = por %p79, %p80
      %p82 = scmp.ne.s32.totalorder %s71, %s74
      %p83 = scmp.eq.s32.totalorder %s28, 3
      %p84 = por %p82, %p83
      %p85 = scmp.ne.s32.totalorder %s74, %s75
      %p86 = scmp.eq.s32.totalorder %s28, 0
      %p87 = por %p85, %p86
      %p88 = scmp.ne.s32.totalorder %s74, %s75
      %p89 = scmp.eq.s32.totalorder %s29, 3
      %p90 = por %p88, %p89
      %p92 = scmp.ne.s32.totalorder %s75, %s91
      %p93 = scmp.eq.s32.totalorder %s29, 0
      %p94 = por %p92, %p93
      %s95 = ssub.s32 %s31, %s38
      %p96 = scmp.eq.s32.totalorder %s95, 0
      %s98 = sadd.s32 %s97, 1
      %s99 = scalar_select %p96, %s97, %s98
      %p102 = pneg %p96
      %p103 = scmp.eq.s32.totalorder %s23, 3
      %p104 = por %p102, %p103
      %p105 = scmp.ne.s32.totalorder %s97, %s100
      %p106 = scmp.eq.s32.totalorder %s23, 0
      %p107 = por %p105, %p106
      %p108 = scmp.ne.s32.totalorder %s97, %s100
      %p109 = scmp.eq.s32.totalorder %s28, 3
      %p110 = por %p108, %p109
      %p111 = scmp.ne.s32.totalorder %s100, %s101
      %p112 = scmp.eq.s32.totalorder %s28, 0
      %p113 = por %p111, %p112
      %p114 = scmp.ne.s32.totalorder %s100, %s101
      %p115 = scmp.eq.s32.totalorder %s29, 3
      %p116 = por %p114, %p115
      %p118 = scmp.ne.s32.totalorder %s101, %s117
      %p119 = scmp.eq.s32.totalorder %s29, 0
      %p120 = por %p118, %p119
      %s121 = ssub.s32 %s31, %s38
      %p122 = scmp.eq.s32.totalorder %s121, 0
      %s124 = sadd.s32 %s123, 1
      %s125 = scalar_select %p122, %s123, %s124
      %p128 = pneg %p122
      %p129 = scmp.eq.s32.totalorder %s23, 3
      %p130 = por %p128, %p129
      %p131 = scmp.ne.s32.totalorder %s123, %s126
      %p132 = scmp.eq.s32.totalorder %s23, 0
      %p133 = por %p131, %p132
      %p134 = scmp.ne.s32.totalorder %s123, %s126
      %p135 = scmp.eq.s32.totalorder %s28, 3
      %p136 = por %p134, %p135
      %p137 = scmp.ne.s32.totalorder %s126, %s127
      %p138 = scmp.eq.s32.totalorder %s28, 0
      %p139 = por %p137, %p138
      %p140 = scmp.ne.s32.totalorder %s126, %s127
      %p141 = scmp.eq.s32.totalorder %s29, 3
      %p142 = por %p140, %p141
      %p144 = scmp.ne.s32.totalorder %s127, %s143
      %p145 = scmp.eq.s32.totalorder %s29, 0
      %p146 = por %p144, %p145
      %s148 = sadd.s32 %s147, 1
      %p151 = scmp.eq.s32.totalorder %s23, 3
      %p152 = scmp.ne.s32.totalorder %s147, %s149
      %p153 = scmp.eq.s32.totalorder %s23, 0
      %p154 = por %p152, %p153
      %p155 = scmp.ne.s32.totalorder %s147, %s149
      %p156 = scmp.eq.s32.totalorder %s28, 3
      %p157 = por %p155, %p156
      %p158 = scmp.ne.s32.totalorder %s149, %s150
      %p159 = scmp.eq.s32.totalorder %s28, 0
      %p160 = por %p158, %p159
      %p161 = scmp.ne.s32.totalorder %s149, %s150
      %p162 = scmp.eq.s32.totalorder %s29, 3
      %p163 = por %p161, %p162
      %p165 = scmp.ne.s32.totalorder %s150, %s164
      %p166 = scmp.eq.s32.totalorder %s29, 0
      %p167 = por %p165, %p166
      %s168 = ssub.s32 %s30, %s42
      %p169 = scmp.eq.s32.totalorder %s168, 0
      %s171 = sadd.s32 %s170, 1
      %s172 = scalar_select %p169, %s170, %s171
      %p175 = pneg %p169
      %p176 = scmp.eq.s32.totalorder %s23, 3
      %p177 = por %p175, %p176
      %p178 = scmp.ne.s32.totalorder %s170, %s173
      %p179 = scmp.eq.s32.totalorder %s23, 0
      %p180 = por %p178, %p179
      %p181 = scmp.ne.s32.totalorder %s170, %s173
      %p182 = scmp.eq.s32.totalorder %s28, 3
      %p183 = por %p181, %p182
      %p184 = scmp.ne.s32.totalorder %s173, %s174
      %p185 = scmp.eq.s32.totalorder %s28, 0
      %p186 = por %p184, %p185
      %p187 = scmp.ne.s32.totalorder %s173, %s174
      %p188 = scmp.eq.s32.totalorder %s29, 3
      %p189 = por %p187, %p188
      %p191 = scmp.ne.s32.totalorder %s174, %s190
      %p192 = scmp.eq.s32.totalorder %s29, 0
      %p193 = por %p191, %p192
      %p194 = scmp.le.s32.totalorder 1, %s23
      %p195 = scmp.lt.s32.totalorder %s23, 5
      %p196 = pnand %p194, %p195
      %p197 = pneg %p196
      // Predicated region
      $region9: #{tpu_custom_call.1} parent=5 // pred_check
        _
      $region10: #{tpu_custom_call.1} parent=5 // pred_check_branch
        %199 = sbr.rel (%p196) target = $region12
      $region11: #{tpu_custom_call.1} parent=5 // pred_region
        %s200 = ssub.s32 %s23, 1
        // Predicated region
        $region13: #{tpu_custom_call.1} parent=11 // pred_check
          %p201 = pneg %p160
        $region14: #{tpu_custom_call.1} parent=11 // pred_check_branch
          %203 = sbr.rel (%p201) target = $region16
        $region15: #{tpu_custom_call.1} parent=11 // pred_region
          _
        $region16: #{tpu_custom_call.1} parent=11 // pred_fallthru
          _
      $region12: #{tpu_custom_call.1} parent=5 // pred_fallthru
        _
      %p204 = scmp.lt.s32.totalorder %s23, 4
      // Predicated region
      $region17: #{tpu_custom_call.1} parent=5 // pred_check
        %p205 = pneg %p204
      $region18: #{tpu_custom_call.1} parent=5 // pred_check_branch
        %207 = sbr.rel (%p205) target = $region20
      $region19: #{tpu_custom_call.1} parent=5 // pred_region
        // Predicated region
        $region21: #{tpu_custom_call.1} parent=19 // pred_check
          %p208 = pneg %p55
        $region22: #{tpu_custom_call.1} parent=19 // pred_check_branch
          %210 = sbr.rel (%p208) target = $region24
        $region23: #{tpu_custom_call.1} parent=19 // pred_region
          %s211 = sand.u32 %s45, 1
          %s212 = scalar_lea.sflag [#allocation4], %s211
          %s213 = sand.u32 %s45, 1
          %s214 = smul.addr %s213, 64
          %s215 = scalar_lea.vmem [#allocation3], %s214
          %s216 = smul.u32 16, %s30
          %s218 = ssub.s32 1024, 1024
          %219 = vsyncadd %s212, %s218
          %s220 = smul.addr %s216, 64
          %s221 = scalar_lea.hbm %s0, %s220
          %s222 = sshll.u32 %s215, 4
          %s223 = int_to_ptr.vmem [resolvable:$true] %s222
          %228 = dma.hbm_to_vmem [thread:$0]  %s221, 1024, %s223, %s212, 64, 64, 4
        $region24: #{tpu_custom_call.1} parent=19 // pred_fallthru
          _
        // Predicated region
        $region25: #{tpu_custom_call.1} parent=19 // pred_check
          %p229 = pneg %p81
        $region26: #{tpu_custom_call.1} parent=19 // pred_check_branch
          %231 = sbr.rel (%p229) target = $region28
        $region27: #{tpu_custom_call.1} parent=19 // pred_region
          %s232 = sand.u32 %s23, 1
          %s233 = scalar_lea.sflag [#allocation7], %s232
          %s234 = sand.u32 %s71, 1
          %s235 = smul.addr %s234, 256
          %s236 = scalar_lea.vmem [#allocation6], %s235
          %s237 = smul.u32 4, %s31
          %s239 = ssub.s32 4096, 4096
          %240 = vsyncadd %s233, %s239
          %s241 = smul.addr %s237, 64
          %s242 = scalar_lea.hbm %s1, %s241
          %s243 = sshll.u32 %s236, 4
          %s244 = int_to_ptr.vmem [resolvable:$true] %s243
          %249 = dma.hbm_to_vmem [thread:$0]  %s242, 4096, %s244, %s233, 512, 256, 16
        $region28: #{tpu_custom_call.1} parent=19 // pred_fallthru
          _
        // Predicated region
        $region29: #{tpu_custom_call.1} parent=19 // pred_check
          %p250 = pneg %p107
        $region30: #{tpu_custom_call.1} parent=19 // pred_check_branch
          %252 = sbr.rel (%p250) target = $region32
        $region31: #{tpu_custom_call.1} parent=19 // pred_region
          %s253 = sand.u32 %s23, 1
          %s254 = scalar_lea.sflag [#allocation7], %s253
          %s255 = sand.u32 %s97, 1
          %s256 = smul.addr %s255, 4
          %s257 = scalar_lea.vmem [#allocation8], %s256
          %s258 = smul.u32 4, %s31
          %s260 = ssub.s32 64, 64
          %261 = vsyncadd %s254, %s260
          %s262 = smul.addr %s258, 16
          %s263 = scalar_lea.hbm %s2, %s262
          %s265 = sshll.u32 %s257, 4
          %s266 = int_to_ptr.vmem [resolvable:$true] %s265
          %268 = dma.hbm_to_vmem [thread:$0]  %s263, 64, %s266, %s254
        $region32: #{tpu_custom_call.1} parent=19 // pred_fallthru
          _
        // Predicated region
        $region33: #{tpu_custom_call.1} parent=19 // pred_check
          %p269 = pneg %p133
        $region34: #{tpu_custom_call.1} parent=19 // pred_check_branch
          %271 = sbr.rel (%p269) target = $region36
        $region35: #{tpu_custom_call.1} parent=19 // pred_region
          %s272 = sand.u32 %s123, 1
          %s273 = scalar_lea.sflag [#allocation10], %s272
          %s274 = sand.u32 %s123, 1
          %s275 = smul.addr %s274, 256
          %s276 = scalar_lea.vmem [#allocation9], %s275
          %s277 = smul.u32 64, %s31
          %s279 = ssub.s32 4096, 4096
          %280 = vsyncadd %s273, %s279
          %s281 = smul.addr %s277, 64
          %s282 = scalar_lea.hbm %s3, %s281
          %s283 = sshll.u32 %s276, 4
          %s284 = int_to_ptr.vmem [resolvable:$true] %s283
          %289 = dma.hbm_to_vmem [thread:$0]  %s282, 4096, %s284, %s273, 64, 64, 4
        $region36: #{tpu_custom_call.1} parent=19 // pred_fallthru
          _
      $region20: #{tpu_custom_call.1} parent=5 // pred_fallthru
        _
      %p290 = scmp.le.s32.totalorder 1, %s23
      %p291 = scmp.lt.s32.totalorder %s23, 5
      %p292 = pnand %p290, %p291
      %p293 = pneg %p292
      // Predicated region
      $region37: #{tpu_custom_call.1} parent=5 // pred_check
        _
      $region38: #{tpu_custom_call.1} parent=5 // pred_check_branch
        %295 = sbr.rel (%p292) target = $region40
      $region39: #{tpu_custom_call.1} parent=5 // pred_region
        %s296 = ssub.s32 %s23, 1
        %s297 = sand.u32 %s48, 1
        %s298 = scalar_lea.sflag [#allocation4], %s297
        %s299 = sand.u32 %s48, 1
        %s300 = smul.addr %s299, 64
        %s301 = scalar_lea.vmem [#allocation3], %s300
        // Predicated region
        $region41: #{tpu_custom_call.1} parent=39 // pred_check
          %p302 = pneg %p61
        $region42: #{tpu_custom_call.1} parent=39 // pred_check_branch
          %304 = sbr.rel (%p302) target = $region44
        $region43: #{tpu_custom_call.1} parent=39 // pred_region
          %305 = dma.done %s298, 1024
        $region44: #{tpu_custom_call.1} parent=39 // pred_fallthru
          _
        %s306 = sand.u32 %s28, 1
        %s307 = scalar_lea.sflag [#allocation7], %s306
        %s308 = sand.u32 %s74, 1
        %s309 = smul.addr %s308, 256
        %s310 = scalar_lea.vmem [#allocation6], %s309
        // Predicated region
        $region45: #{tpu_custom_call.1} parent=39 // pred_check
          %p311 = pneg %p87
        $region46: #{tpu_custom_call.1} parent=39 // pred_check_branch
          %313 = sbr.rel (%p311) target = $region48
        $region47: #{tpu_custom_call.1} parent=39 // pred_region
          %314 = dma.done %s307, 4096
        $region48: #{tpu_custom_call.1} parent=39 // pred_fallthru
          _
        %s315 = sand.u32 %s28, 1
        %s316 = scalar_lea.sflag [#allocation7], %s315
        %s317 = sand.u32 %s100, 1
        %s318 = smul.addr %s317, 4
        %s319 = scalar_lea.vmem [#allocation8], %s318
        // Predicated region
        $region49: #{tpu_custom_call.1} parent=39 // pred_check
          %p320 = pneg %p113
        $region50: #{tpu_custom_call.1} parent=39 // pred_check_branch
          %322 = sbr.rel (%p320) target = $region52
        $region51: #{tpu_custom_call.1} parent=39 // pred_region
          %323 = dma.done %s316, 64
        $region52: #{tpu_custom_call.1} parent=39 // pred_fallthru
          _
        %s324 = sand.u32 %s126, 1
        %s325 = scalar_lea.sflag [#allocation10], %s324
        %s326 = sand.u32 %s126, 1
        %s327 = smul.addr %s326, 256
        %s328 = scalar_lea.vmem [#allocation9], %s327
        // Predicated region
        $region53: #{tpu_custom_call.1} parent=39 // pred_check
          %p329 = pneg %p139
        $region54: #{tpu_custom_call.1} parent=39 // pred_check_branch
          %331 = sbr.rel (%p329) target = $region56
        $region55: #{tpu_custom_call.1} parent=39 // pred_region
          %332 = dma.done %s325, 4096
        $region56: #{tpu_custom_call.1} parent=39 // pred_fallthru
          _
        %s333 = sand.u32 %s48, 1
        %s334 = scalar_lea.sflag [#allocation4], %s333
        %s335 = sand.u32 %s48, 1
        %s336 = smul.addr %s335, 64
        %s337 = scalar_lea.vmem [#allocation3], %s336
        %p338 = pneg %p61
        %p339 = pneg %p58
        %s340 = sand.u32 %s28, 1
        %s341 = scalar_lea.sflag [#allocation7], %s340
        %s342 = sand.u32 %s74, 1
        %s343 = smul.addr %s342, 256
        %s344 = scalar_lea.vmem [#allocation6], %s343
        %p345 = pneg %p87
        %p346 = pneg %p84
        %s347 = sand.u32 %s28, 1
        %s348 = scalar_lea.sflag [#allocation7], %s347
        %s349 = sand.u32 %s100, 1
        %s350 = smul.addr %s349, 4
        %s351 = scalar_lea.vmem [#allocation8], %s350
        %p352 = pneg %p113
        %p353 = pneg %p110
        %s354 = sand.u32 %s126, 1
        %s355 = scalar_lea.sflag [#allocation10], %s354
        %s356 = sand.u32 %s126, 1
        %s357 = smul.addr %s356, 256
        %s358 = scalar_lea.vmem [#allocation9], %s357
        %p359 = pneg %p139
        %p360 = pneg %p136
        %p361 = pneg %p160
        %p362 = pneg %p157
        %p363 = pneg %p186
        %p364 = pneg %p183
        %s365 = sand.u32 %s173, 1
        %s366 = scalar_lea.sflag [#allocation5], %s365
        %s367 = sand.u32 %s173, 1
        %s368 = smul.addr %s367, 64
        %s369 = scalar_lea.vmem [#allocation11], %s368
        %s370 = smul.u32 16, %s32
        %s371 = smul.u32 4, %s33
        %s372 = smul.u32 4, %s33
        %s373 = smul.u32 64, %s33
        %s374 = smul.u32 16, %s32
        %p376 = scmp.eq.s32.totalorder %s33, 0
        // Predicated region
        $region57: #{tpu_custom_call.1} parent=39 // pred_check
          %p377 = pneg %p376
        $region58: #{tpu_custom_call.1} parent=39 // pred_check_branch
          %379 = sbr.rel (%p377) target = $region60
        $region59: #{tpu_custom_call.1} parent=39 // pred_region
          %380 = vst [vmem:[#allocation2] sm:$0xff] 0.0
          %381 = vst [vmem:[#allocation2 + $0x8] sm:$0xff] 0.0
          %382 = vst [vmem:[#allocation2 + $0x10] sm:$0xff] 0.0
          %383 = vst [vmem:[#allocation2 + $0x18] sm:$0xff] 0.0
          %384 = vst [vmem:[#allocation2 + $0x20] sm:$0xff] 0.0
          %385 = vst [vmem:[#allocation2 + $0x28] sm:$0xff] 0.0
          %386 = vst [vmem:[#allocation2 + $0x30] sm:$0xff] 0.0
          %387 = vst [vmem:[#allocation2 + $0x38] sm:$0xff] 0.0
          %388 = vst [vmem:[#allocation2 + $0x40] sm:$0xff] 0.0
          %389 = vst [vmem:[#allocation2 + $0x48] sm:$0xff] 0.0
          %390 = vst [vmem:[#allocation2 + $0x50] sm:$0xff] 0.0
          %391 = vst [vmem:[#allocation2 + $0x58] sm:$0xff] 0.0
          %392 = vst [vmem:[#allocation2 + $0x60] sm:$0xff] 0.0
          %393 = vst [vmem:[#allocation2 + $0x68] sm:$0xff] 0.0
          %394 = vst [vmem:[#allocation2 + $0x70] sm:$0xff] 0.0
          %395 = vst [vmem:[#allocation2 + $0x78] sm:$0xff] 0.0
        $region60: #{tpu_custom_call.1} parent=39 // pred_fallthru
          _
        %v396 = vld [vmem:[%s301] sm:$0xf]
        %v397 = vld [vmem:[%s301 + $0x4] sm:$0xf]
        %v398 = vld [vmem:[%s301 + $0x8] sm:$0xf]
        %v399 = vld [vmem:[%s301 + $0xc] sm:$0xf]
        %v400 = vld [vmem:[%s301 + $0x10] sm:$0xf]
        %v401 = vld [vmem:[%s301 + $0x14] sm:$0xf]
        %v402 = vld [vmem:[%s301 + $0x18] sm:$0xf]
        %v403 = vld [vmem:[%s301 + $0x1c] sm:$0xf]
        %v404 = vld [vmem:[%s301 + $0x20] sm:$0xf]
        %v405 = vld [vmem:[%s301 + $0x24] sm:$0xf]
        %v406 = vld [vmem:[%s301 + $0x28] sm:$0xf]
        %v407 = vld [vmem:[%s301 + $0x2c] sm:$0xf]
        %v408 = vld [vmem:[%s301 + $0x30] sm:$0xf]
        %v409 = vld [vmem:[%s301 + $0x34] sm:$0xf]
        %v410 = vld [vmem:[%s301 + $0x38] sm:$0xf]
        %v411 = vld [vmem:[%s301 + $0x3c] sm:$0xf]
        %v412 = vld [vmem:[%s310] sm:$0xff]
        %v413 = vld [vmem:[%s310 + $0x8] sm:$0xff]
        %v414 = vld [vmem:[%s310 + $0x10] sm:$0xff]
        %v415 = vld [vmem:[%s310 + $0x18] sm:$0xff]
        %v416 = vld [vmem:[%s310 + $0x20] sm:$0xff]
        %v417 = vld [vmem:[%s310 + $0x28] sm:$0xff]
        %v418 = vld [vmem:[%s310 + $0x30] sm:$0xff]
        %v419 = vld [vmem:[%s310 + $0x38] sm:$0xff]
        %v420 = vld [vmem:[%s310 + $0x40] sm:$0xff]
        %v421 = vld [vmem:[%s310 + $0x48] sm:$0xff]
        %v422 = vld [vmem:[%s310 + $0x50] sm:$0xff]
        %v423 = vld [vmem:[%s310 + $0x58] sm:$0xff]
        %v424 = vld [vmem:[%s310 + $0x60] sm:$0xff]
        %v425 = vld [vmem:[%s310 + $0x68] sm:$0xff]
        %v426 = vld [vmem:[%s310 + $0x70] sm:$0xff]
        %v427 = vld [vmem:[%s310 + $0x78] sm:$0xff]
        %v428 = vld [vmem:[%s310 + $0x80] sm:$0xff]
        %v429 = vld [vmem:[%s310 + $0x88] sm:$0xff]
        %v430 = vld [vmem:[%s310 + $0x90] sm:$0xff]
        %v431 = vld [vmem:[%s310 + $0x98] sm:$0xff]
        %v432 = vld [vmem:[%s310 + $0xa0] sm:$0xff]
        %v433 = vld [vmem:[%s310 + $0xa8] sm:$0xff]
        %v434 = vld [vmem:[%s310 + $0xb0] sm:$0xff]
        %v435 = vld [vmem:[%s310 + $0xb8] sm:$0xff]
        %v436 = vld [vmem:[%s310 + $0xc0] sm:$0xff]
        %v437 = vld [vmem:[%s310 + $0xc8] sm:$0xff]
        %v438 = vld [vmem:[%s310 + $0xd0] sm:$0xff]
        %v439 = vld [vmem:[%s310 + $0xd8] sm:$0xff]
        %v440 = vld [vmem:[%s310 + $0xe0] sm:$0xff]
        %v441 = vld [vmem:[%s310 + $0xe8] sm:$0xff]
        %v442 = vld [vmem:[%s310 + $0xf0] sm:$0xff]
        %v443 = vld [vmem:[%s310 + $0xf8] sm:$0xff]
        %v444 = vld [vmem:[%s319] sm:$0xf]
        %v446 = vlaneseq
        %v447 = vshrl.u32 %v446, 7
        %v448 = vsub.s32 0, %v447
        %v449 = vrot.slane %v444, %v448
        %v450 = vlaneseq
        %v451 = vshrl.u32 %v450, 7
        %v452 = vsub.s32 1, %v451
        %v453 = vrot.slane %v444, %v452
        %v454 = vlaneseq
        %v455 = vshrl.u32 %v454, 7
        %v456 = vsub.s32 2, %v455
        %v457 = vrot.slane %v444, %v456
        %v458 = vlaneseq
        %v459 = vshrl.u32 %v458, 7
        %v460 = vsub.s32 3, %v459
        %v461 = vrot.slane %v444, %v460
        %v482 = vunpack.c.l.b16 %v396
        %v483 = vunpack.c.l.b16 %v397
        %v484 = vunpack.c.l.b16 %v398
        %v485 = vunpack.c.l.b16 %v399
        %v486 = vunpack.c.l.b16 %v400
        %v487 = vunpack.c.l.b16 %v401
        %v488 = vunpack.c.l.b16 %v402
        %v489 = vunpack.c.l.b16 %v403
        %v490 = vunpack.c.l.b16 %v404
        %v491 = vunpack.c.l.b16 %v405
        %v492 = vunpack.c.l.b16 %v406
        %v493 = vunpack.c.l.b16 %v407
        %v494 = vunpack.c.l.b16 %v408
        %v495 = vunpack.c.l.b16 %v409
        %v496 = vunpack.c.l.b16 %v410
        %v497 = vunpack.c.l.b16 %v411
        %v498 = vpack.c.b16 %v483, %v482
        %v499 = vpack.c.b16 %v485, %v484
        %v500 = vpack.c.b16 %v487, %v486
        %v501 = vpack.c.b16 %v489, %v488
        %v502 = vpack.c.b16 %v491, %v490
        %v503 = vpack.c.b16 %v493, %v492
        %v504 = vpack.c.b16 %v495, %v494
        %v505 = vpack.c.b16 %v497, %v496
        %v546 = vunpack.c.l.b16 %v412
        %v547 = vunpack.c.h.b16 %v412
        %v548 = vunpack.c.l.b16 %v413
        %v549 = vunpack.c.h.b16 %v413
        %v550 = vunpack.c.l.b16 %v414
        %v551 = vunpack.c.h.b16 %v414
        %v552 = vunpack.c.l.b16 %v415
        %v553 = vunpack.c.h.b16 %v415
        %v554 = vunpack.c.l.b16 %v416
        %v555 = vunpack.c.h.b16 %v416
        %v556 = vunpack.c.l.b16 %v417
        %v557 = vunpack.c.h.b16 %v417
        %v558 = vunpack.c.l.b16 %v418
        %v559 = vunpack.c.h.b16 %v418
        %v560 = vunpack.c.l.b16 %v419
        %v561 = vunpack.c.h.b16 %v419
        %v562 = vunpack.c.l.b16 %v420
        %v563 = vunpack.c.h.b16 %v420
        %v564 = vunpack.c.l.b16 %v421
        %v565 = vunpack.c.h.b16 %v421
        %v566 = vunpack.c.l.b16 %v422
        %v567 = vunpack.c.h.b16 %v422
        %v568 = vunpack.c.l.b16 %v423
        %v569 = vunpack.c.h.b16 %v423
        %v570 = vunpack.c.l.b16 %v424
        %v571 = vunpack.c.h.b16 %v424
        %v572 = vunpack.c.l.b16 %v425
        %v573 = vunpack.c.h.b16 %v425
        %v574 = vunpack.c.l.b16 %v426
        %v575 = vunpack.c.h.b16 %v426
        %v576 = vunpack.c.l.b16 %v427
        %v577 = vunpack.c.h.b16 %v427
        %v578 = vunpack.c.l.b16 %v428
        %v579 = vunpack.c.h.b16 %v428
        %v580 = vunpack.c.l.b16 %v429
        %v581 = vunpack.c.h.b16 %v429
        %v582 = vunpack.c.l.b16 %v430
        %v583 = vunpack.c.h.b16 %v430
        %v584 = vunpack.c.l.b16 %v431
        %v585 = vunpack.c.h.b16 %v431
        %v586 = vunpack.c.l.b16 %v432
        %v587 = vunpack.c.h.b16 %v432
        %v588 = vunpack.c.l.b16 %v433
        %v589 = vunpack.c.h.b16 %v433
        %v590 = vunpack.c.l.b16 %v434
        %v591 = vunpack.c.h.b16 %v434
        %v592 = vunpack.c.l.b16 %v435
        %v593 = vunpack.c.h.b16 %v435
        %v594 = vunpack.c.l.b16 %v436
        %v595 = vunpack.c.h.b16 %v436
        %v596 = vunpack.c.l.b16 %v437
        %v597 = vunpack.c.h.b16 %v437
        %v598 = vunpack.c.l.b16 %v438
        %v599 = vunpack.c.h.b16 %v438
        %v600 = vunpack.c.l.b16 %v439
        %v601 = vunpack.c.h.b16 %v439
        %v602 = vunpack.c.l.b16 %v440
        %v603 = vunpack.c.h.b16 %v440
        %v604 = vunpack.c.l.b16 %v441
        %v605 = vunpack.c.h.b16 %v441
        %v606 = vunpack.c.l.b16 %v442
        %v607 = vunpack.c.h.b16 %v442
        %v608 = vunpack.c.l.b16 %v443
        %v609 = vunpack.c.h.b16 %v443
        %v610 = vpack.c.b16 %v550, %v546
        %v611 = vpack.c.b16 %v551, %v547
        %v612 = vpack.c.b16 %v552, %v548
        %v613 = vpack.c.b16 %v553, %v549
        %v614 = vpack.c.b16 %v558, %v554
        %v615 = vpack.c.b16 %v559, %v555
        %v616 = vpack.c.b16 %v560, %v556
        %v617 = vpack.c.b16 %v561, %v557
        %v618 = vpack.c.b16 %v566, %v562
        %v619 = vpack.c.b16 %v567, %v563
        %v620 = vpack.c.b16 %v568, %v564
        %v621 = vpack.c.b16 %v569, %v565
        %v622 = vpack.c.b16 %v574, %v570
        %v623 = vpack.c.b16 %v575, %v571
        %v624 = vpack.c.b16 %v576, %v572
        %v625 = vpack.c.b16 %v577, %v573
        %v626 = vpack.c.b16 %v582, %v578
        %v627 = vpack.c.b16 %v583, %v579
        %v628 = vpack.c.b16 %v584, %v580
        %v629 = vpack.c.b16 %v585, %v581
        %v630 = vpack.c.b16 %v590, %v586
        %v631 = vpack.c.b16 %v591, %v587
        %v632 = vpack.c.b16 %v592, %v588
        %v633 = vpack.c.b16 %v593, %v589
        %v634 = vpack.c.b16 %v598, %v594
        %v635 = vpack.c.b16 %v599, %v595
        %v636 = vpack.c.b16 %v600, %v596
        %v637 = vpack.c.b16 %v601, %v597
        %v638 = vpack.c.b16 %v606, %v602
        %v639 = vpack.c.b16 %v607, %v603
        %v640 = vpack.c.b16 %v608, %v604
        %v641 = vpack.c.b16 %v609, %v605
        %674 = vmatprep.subr.bf16.mxu0 %v611
        %675 = vmatpush1.bf16.msra.mxu0 %v610
        %676 = vmatprep.subr.bf16.mxu0 %v615
        %677 = vmatpush1.bf16.msra.mxu0 %v614
        %678 = vmatprep.subr.bf16.mxu0 %v619
        %679 = vmatpush1.bf16.msra.mxu0 %v618
        %680 = vmatprep.subr.bf16.mxu0 %v623
        %681 = vmatpush1.bf16.msra.mxu0 %v622
        %682 = vmatprep.subr.bf16.mxu0 %v627
        %683 = vmatpush1.bf16.msra.mxu0 %v626
        %684 = vmatprep.subr.bf16.mxu0 %v631
        %685 = vmatpush1.bf16.msra.mxu0 %v630
        %686 = vmatprep.subr.bf16.mxu0 %v635
        %687 = vmatpush1.bf16.msra.mxu0 %v634
        %688 = vmatprep.subr.bf16.mxu0 %v639
        %689 = vmatpush1.bf16.msra.mxu0 %v638
        %690 = vmatprep.subr.bf16.mxu0 0
        %691 = vmatpush1.bf16.msra.mxu0 0
        %692 = vmatprep.subr.bf16.mxu0 0
        %693 = vmatpush1.bf16.msra.mxu0 0
        %694 = vmatprep.subr.bf16.mxu0 0
        %695 = vmatpush1.bf16.msra.mxu0 0
        %696 = vmatprep.subr.bf16.mxu0 0
        %697 = vmatpush1.bf16.msra.mxu0 0
        %698 = vmatprep.subr.bf16.mxu0 0
        %699 = vmatpush1.bf16.msra.mxu0 0
        %700 = vmatprep.subr.bf16.mxu0 0
        %701 = vmatpush1.bf16.msra.mxu0 0
        %702 = vmatprep.subr.bf16.mxu0 0
        %703 = vmatpush1.bf16.msra.mxu0 0
        %704 = vmatprep.subr.bf16.mxu0 0
        %705 = vmatpush1.bf16.msra.mxu0 0
        %706 = vmatprep.mubr.bf16.mxu0 0
        %707 = vmatmul.mubr.bf16.gmra.mrb[0].mxu0 %v498
        %v708 = vpop.f32.mrb[0].mxu0
        %v709 = vadd.f32 %v449, %v708
        %v710 = vpop.f32.mrb[0].mxu0
        %v711 = vadd.f32 %v453, %v710
        %v712 = vpop.f32.mrb[0].mxu0
        %v713 = vadd.f32 %v449, %v712
        %v714 = vpop.f32.mrb[0].mxu0
        %v715 = vadd.f32 %v453, %v714
        %716 = vmatprep.mubr.bf16.mxu0 0
        %717 = vmatmul.mubr.bf16.gmra.mrb[0].mxu0 %v499
        %v718 = vpop.f32.mrb[0].mxu0
        %v719 = vadd.f32 %v449, %v718
        %v720 = vpop.f32.mrb[0].mxu0
        %v721 = vadd.f32 %v453, %v720
        %v722 = vpop.f32.mrb[0].mxu0
        %v723 = vadd.f32 %v449, %v722
        %v724 = vpop.f32.mrb[0].mxu0
        %v725 = vadd.f32 %v453, %v724
        %726 = vmatprep.mubr.bf16.mxu0 0
        %727 = vmatmul.mubr.bf16.gmra.mrb[0].mxu0 %v500
        %v728 = vpop.f32.mrb[0].mxu0
        %v729 = vadd.f32 %v449, %v728
        %v730 = vpop.f32.mrb[0].mxu0
        %v731 = vadd.f32 %v453, %v730
        %v732 = vpop.f32.mrb[0].mxu0
        %v733 = vadd.f32 %v449, %v732
        %v734 = vpop.f32.mrb[0].mxu0
        %v735 = vadd.f32 %v453, %v734
        %736 = vmatprep.mubr.bf16.mxu0 0
        %737 = vmatmul.mubr.bf16.gmra.mrb[0].mxu0 %v501
        %v738 = vpop.f32.mrb[0].mxu0
        %v739 = vadd.f32 %v449, %v738
        %v740 = vpop.f32.mrb[0].mxu0
        %v741 = vadd.f32 %v453, %v740
        %v742 = vpop.f32.mrb[0].mxu0
        %v743 = vadd.f32 %v449, %v742
        %v744 = vpop.f32.mrb[0].mxu0
        %v745 = vadd.f32 %v453, %v744
        %746 = vmatprep.mubr.bf16.mxu0 0
        %747 = vmatmul.mubr.bf16.gmra.mrb[0].mxu0 %v502
        %v748 = vpop.f32.mrb[0].mxu0
        %v749 = vadd.f32 %v449, %v748
        %v750 = vpop.f32.mrb[0].mxu0
        %v751 = vadd.f32 %v453, %v750
        %v752 = vpop.f32.mrb[0].mxu0
        %v753 = vadd.f32 %v449, %v752
        %v754 = vpop.f32.mrb[0].mxu0
        %v755 = vadd.f32 %v453, %v754
        %756 = vmatprep.mubr.bf16.mxu0 0
        %757 = vmatmul.mubr.bf16.gmra.mrb[0].mxu0 %v503
        %v758 = vpop.f32.mrb[0].mxu0
        %v759 = vadd.f32 %v449, %v758
        %v760 = vpop.f32.mrb[0].mxu0
        %v761 = vadd.f32 %v453, %v760
        %v762 = vpop.f32.mrb[0].mxu0
        %v763 = vadd.f32 %v449, %v762
        %v764 = vpop.f32.mrb[0].mxu0
        %v765 = vadd.f32 %v453, %v764
        %766 = vmatprep.mubr.bf16.mxu0 0
        %767 = vmatmul.mubr.bf16.gmra.mrb[0].mxu0 %v504
        %v768 = vpop.f32.mrb[0].mxu0
        %v769 = vadd.f32 %v449, %v768
        %v770 = vpop.f32.mrb[0].mxu0
        %v771 = vadd.f32 %v453, %v770
        %v772 = vpop.f32.mrb[0].mxu0
        %v773 = vadd.f32 %v449, %v772
        %v774 = vpop.f32.mrb[0].mxu0
        %v775 = vadd.f32 %v453, %v774
        %776 = vmatprep.mubr.bf16.mxu0 0
        %777 = vmatmul.mubr.bf16.gmra.mrb[0].mxu0 %v505
        %v778 = vpop.f32.mrb[0].mxu0
        %v779 = vadd.f32 %v449, %v778
        %v780 = vpop.f32.mrb[0].mxu0
        %v781 = vadd.f32 %v453, %v780
        %v782 = vpop.f32.mrb[0].mxu0
        %v783 = vadd.f32 %v449, %v782
        %v784 = vpop.f32.mrb[0].mxu0
        %v785 = vadd.f32 %v453, %v784
        %786 = vdwg.mxu0
        %787 = vmatprep.subr.bf16.mxu0 %v613
        %788 = vmatpush1.bf16.msra.mxu0 %v612
        %789 = vmatprep.subr.bf16.mxu0 %v617
        %790 = vmatpush1.bf16.msra.mxu0 %v616
        %791 = vmatprep.subr.bf16.mxu0 %v621
        %792 = vmatpush1.bf16.msra.mxu0 %v620
        %793 = vmatprep.subr.bf16.mxu0 %v625
        %794 = vmatpush1.bf16.msra.mxu0 %v624
        %795 = vmatprep.subr.bf16.mxu0 %v629
        %796 = vmatpush1.bf16.msra.mxu0 %v628
        %797 = vmatprep.subr.bf16.mxu0 %v633
        %798 = vmatpush1.bf16.msra.mxu0 %v632
        %799 = vmatprep.subr.bf16.mxu0 %v637
        %800 = vmatpush1.bf16.msra.mxu0 %v636
        %801 = vmatprep.subr.bf16.mxu0 %v641
        %802 = vmatpush1.bf16.msra.mxu0 %v640
        %803 = vmatprep.subr.bf16.mxu0 0
        %804 = vmatpush1.bf16.msra.mxu0 0
        %805 = vmatprep.subr.bf16.mxu0 0
        %806 = vmatpush1.bf16.msra.mxu0 0
        %807 = vmatprep.subr.bf16.mxu0 0
        %808 = vmatpush1.bf16.msra.mxu0 0
        %809 = vmatprep.subr.bf16.mxu0 0
        %810 = vmatpush1.bf16.msra.mxu0 0
        %811 = vmatprep.subr.bf16.mxu0 0
        %812 = vmatpush1.bf16.msra.mxu0 0
        %813 = vmatprep.subr.bf16.mxu0 0
        %814 = vmatpush1.bf16.msra.mxu0 0
        %815 = vmatprep.subr.bf16.mxu0 0
        %816 = vmatpush1.bf16.msra.mxu0 0
        %817 = vmatprep.subr.bf16.mxu0 0
        %818 = vmatpush1.bf16.msra.mxu0 0
        %819 = vmatprep.mubr.bf16.mxu0 0
        %820 = vmatmul.mubr.bf16.gmra.mrb[0].mxu0 %v498
        %v821 = vpop.f32.mrb[0].mxu0
        %v822 = vadd.f32 %v457, %v821
        %v823 = vpop.f32.mrb[0].mxu0
        %v824 = vadd.f32 %v461, %v823
        %v825 = vpop.f32.mrb[0].mxu0
        %v826 = vadd.f32 %v457, %v825
        %v827 = vpop.f32.mrb[0].mxu0
        %v828 = vadd.f32 %v461, %v827
        %829 = vmatprep.mubr.bf16.mxu0 0
        %830 = vmatmul.mubr.bf16.gmra.mrb[0].mxu0 %v499
        %v831 = vpop.f32.mrb[0].mxu0
        %v832 = vadd.f32 %v457, %v831
        %v833 = vpop.f32.mrb[0].mxu0
        %v834 = vadd.f32 %v461, %v833
        %v835 = vpop.f32.mrb[0].mxu0
        %v836 = vadd.f32 %v457, %v835
        %v837 = vpop.f32.mrb[0].mxu0
        %v838 = vadd.f32 %v461, %v837
        %839 = vmatprep.mubr.bf16.mxu0 0
        %840 = vmatmul.mubr.bf16.gmra.mrb[0].mxu0 %v500
        %v841 = vpop.f32.mrb[0].mxu0
        %v842 = vadd.f32 %v457, %v841
        %v843 = vpop.f32.mrb[0].mxu0
        %v844 = vadd.f32 %v461, %v843
        %v845 = vpop.f32.mrb[0].mxu0
        %v846 = vadd.f32 %v457, %v845
        %v847 = vpop.f32.mrb[0].mxu0
        %v848 = vadd.f32 %v461, %v847
        %849 = vmatprep.mubr.bf16.mxu0 0
        %850 = vmatmul.mubr.bf16.gmra.mrb[0].mxu0 %v501
        %v851 = vpop.f32.mrb[0].mxu0
        %v852 = vadd.f32 %v457, %v851
        %v853 = vpop.f32.mrb[0].mxu0
        %v854 = vadd.f32 %v461, %v853
        %v855 = vpop.f32.mrb[0].mxu0
        %v856 = vadd.f32 %v457, %v855
        %v857 = vpop.f32.mrb[0].mxu0
        %v858 = vadd.f32 %v461, %v857
        %859 = vmatprep.mubr.bf16.mxu0 0
        %860 = vmatmul.mubr.bf16.gmra.mrb[0].mxu0 %v502
        %v861 = vpop.f32.mrb[0].mxu0
        %v862 = vadd.f32 %v457, %v861
        %v863 = vpop.f32.mrb[0].mxu0
        %v864 = vadd.f32 %v461, %v863
        %v865 = vpop.f32.mrb[0].mxu0
        %v866 = vadd.f32 %v457, %v865
        %v867 = vpop.f32.mrb[0].mxu0
        %v868 = vadd.f32 %v461, %v867
        %869 = vmatprep.mubr.bf16.mxu0 0
        %870 = vmatmul.mubr.bf16.gmra.mrb[0].mxu0 %v503
        %v871 = vpop.f32.mrb[0].mxu0
        %v872 = vadd.f32 %v457, %v871
        %v873 = vpop.f32.mrb[0].mxu0
        %v874 = vadd.f32 %v461, %v873
        %v875 = vpop.f32.mrb[0].mxu0
        %v876 = vadd.f32 %v457, %v875
        %v877 = vpop.f32.mrb[0].mxu0
        %v878 = vadd.f32 %v461, %v877
        %879 = vmatprep.mubr.bf16.mxu0 0
        %880 = vmatmul.mubr.bf16.gmra.mrb[0].mxu0 %v504
        %v881 = vpop.f32.mrb[0].mxu0
        %v882 = vadd.f32 %v457, %v881
        %v883 = vpop.f32.mrb[0].mxu0
        %v884 = vadd.f32 %v461, %v883
        %v885 = vpop.f32.mrb[0].mxu0
        %v886 = vadd.f32 %v457, %v885
        %v887 = vpop.f32.mrb[0].mxu0
        %v888 = vadd.f32 %v461, %v887
        %889 = vmatprep.mubr.bf16.mxu0 0
        %890 = vmatmul.mubr.bf16.gmra.mrb[0].mxu0 %v505
        %v891 = vpop.f32.mrb[0].mxu0
        %v892 = vadd.f32 %v457, %v891
        %v893 = vpop.f32.mrb[0].mxu0
        %v894 = vadd.f32 %v461, %v893
        %v895 = vpop.f32.mrb[0].mxu0
        %v896 = vadd.f32 %v457, %v895
        %v897 = vpop.f32.mrb[0].mxu0
        %v898 = vadd.f32 %v461, %v897
        %899 = vdwg.mxu0
        %v900 = vmax.f32 %v709, 0.0
        %v901 = vmax.f32 %v711, 0.0
        %v902 = vmax.f32 %v822, 0.0
        %v903 = vmax.f32 %v824, 0.0
        %v904 = vmax.f32 %v713, 0.0
        %v905 = vmax.f32 %v715, 0.0
        %v906 = vmax.f32 %v826, 0.0
        %v907 = vmax.f32 %v828, 0.0
        %v908 = vmax.f32 %v719, 0.0
        %v909 = vmax.f32 %v721, 0.0
        %v910 = vmax.f32 %v832, 0.0
        %v911 = vmax.f32 %v834, 0.0
        %v912 = vmax.f32 %v723, 0.0
        %v913 = vmax.f32 %v725, 0.0
        %v914 = vmax.f32 %v836, 0.0
        %v915 = vmax.f32 %v838, 0.0
        %v916 = vmax.f32 %v729, 0.0
        %v917 = vmax.f32 %v731, 0.0
        %v918 = vmax.f32 %v842, 0.0
        %v919 = vmax.f32 %v844, 0.0
        %v920 = vmax.f32 %v733, 0.0
        %v921 = vmax.f32 %v735, 0.0
        %v922 = vmax.f32 %v846, 0.0
        %v923 = vmax.f32 %v848, 0.0
        %v924 = vmax.f32 %v739, 0.0
        %v925 = vmax.f32 %v741, 0.0
        %v926 = vmax.f32 %v852, 0.0
        %v927 = vmax.f32 %v854, 0.0
        %v928 = vmax.f32 %v743, 0.0
        %v929 = vmax.f32 %v745, 0.0
        %v930 = vmax.f32 %v856, 0.0
        %v931 = vmax.f32 %v858, 0.0
        %v932 = vmax.f32 %v749, 0.0
        %v933 = vmax.f32 %v751, 0.0
        %v934 = vmax.f32 %v862, 0.0
        %v935 = vmax.f32 %v864, 0.0
        %v936 = vmax.f32 %v753, 0.0
        %v937 = vmax.f32 %v755, 0.0
        %v938 = vmax.f32 %v866, 0.0
        %v939 = vmax.f32 %v868, 0.0
        %v940 = vmax.f32 %v759, 0.0
        %v941 = vmax.f32 %v761, 0.0
        %v942 = vmax.f32 %v872, 0.0
        %v943 = vmax.f32 %v874, 0.0
        %v944 = vmax.f32 %v763, 0.0
        %v945 = vmax.f32 %v765, 0.0
        %v946 = vmax.f32 %v876, 0.0
        %v947 = vmax.f32 %v878, 0.0
        %v948 = vmax.f32 %v769, 0.0
        %v949 = vmax.f32 %v771, 0.0
        %v950 = vmax.f32 %v882, 0.0
        %v951 = vmax.f32 %v884, 0.0
        %v952 = vmax.f32 %v773, 0.0
        %v953 = vmax.f32 %v775, 0.0
        %v954 = vmax.f32 %v886, 0.0
        %v955 = vmax.f32 %v888, 0.0
        %v956 = vmax.f32 %v779, 0.0
        %v957 = vmax.f32 %v781, 0.0
        %v958 = vmax.f32 %v892, 0.0
        %v959 = vmax.f32 %v894, 0.0
        %v960 = vmax.f32 %v783, 0.0
        %v961 = vmax.f32 %v785, 0.0
        %v962 = vmax.f32 %v896, 0.0
        %v963 = vmax.f32 %v898, 0.0
        %v964 = vld [vmem:[#allocation2] sm:$0xff]
        %v965 = vld [vmem:[#allocation2 + $0x8] sm:$0xff]
        %v966 = vld [vmem:[#allocation2 + $0x10] sm:$0xff]
        %v967 = vld [vmem:[#allocation2 + $0x18] sm:$0xff]
        %v968 = vld [vmem:[#allocation2 + $0x20] sm:$0xff]
        %v969 = vld [vmem:[#allocation2 + $0x28] sm:$0xff]
        %v970 = vld [vmem:[#allocation2 + $0x30] sm:$0xff]
        %v971 = vld [vmem:[#allocation2 + $0x38] sm:$0xff]
        %v972 = vld [vmem:[#allocation2 + $0x40] sm:$0xff]
        %v973 = vld [vmem:[#allocation2 + $0x48] sm:$0xff]
        %v974 = vld [vmem:[#allocation2 + $0x50] sm:$0xff]
        %v975 = vld [vmem:[#allocation2 + $0x58] sm:$0xff]
        %v976 = vld [vmem:[#allocation2 + $0x60] sm:$0xff]
        %v977 = vld [vmem:[#allocation2 + $0x68] sm:$0xff]
        %v978 = vld [vmem:[#allocation2 + $0x70] sm:$0xff]
        %v979 = vld [vmem:[#allocation2 + $0x78] sm:$0xff]
        %v980 = vpack.c.bf16 %v904, %v900
        %v981 = vpack.c.bf16 %v905, %v901
        %v982 = vpack.c.bf16 %v906, %v902
        %v983 = vpack.c.bf16 %v907, %v903
        %v984 = vpack.c.bf16 %v912, %v908
        %v985 = vpack.c.bf16 %v913, %v909
        %v986 = vpack.c.bf16 %v914, %v910
        %v987 = vpack.c.bf16 %v915, %v911
        %v988 = vpack.c.bf16 %v920, %v916
        %v989 = vpack.c.bf16 %v921, %v917
        %v990 = vpack.c.bf16 %v922, %v918
        %v991 = vpack.c.bf16 %v923, %v919
        %v992 = vpack.c.bf16 %v928, %v924
        %v993 = vpack.c.bf16 %v929, %v925
        %v994 = vpack.c.bf16 %v930, %v926
        %v995 = vpack.c.bf16 %v931, %v927
        %v996 = vpack.c.bf16 %v936, %v932
        %v997 = vpack.c.bf16 %v937, %v933
        %v998 = vpack.c.bf16 %v938, %v934
        %v999 = vpack.c.bf16 %v939, %v935
        %v1000 = vpack.c.bf16 %v944, %v940
        %v1001 = vpack.c.bf16 %v945, %v941
        %v1002 = vpack.c.bf16 %v946, %v942
        %v1003 = vpack.c.bf16 %v947, %v943
        %v1004 = vpack.c.bf16 %v952, %v948
        %v1005 = vpack.c.bf16 %v953, %v949
        %v1006 = vpack.c.bf16 %v954, %v950
        %v1007 = vpack.c.bf16 %v955, %v951
        %v1008 = vpack.c.bf16 %v960, %v956
        %v1009 = vpack.c.bf16 %v961, %v957
        %v1010 = vpack.c.bf16 %v962, %v958
        %v1011 = vpack.c.bf16 %v963, %v959
        %v1012 = vld [vmem:[%s328] sm:$0xf]
        %v1013 = vld [vmem:[%s328 + $0x4] sm:$0xf]
        %v1014 = vld [vmem:[%s328 + $0x8] sm:$0xf]
        %v1015 = vld [vmem:[%s328 + $0xc] sm:$0xf]
        %v1016 = vld [vmem:[%s328 + $0x10] sm:$0xf]
        %v1017 = vld [vmem:[%s328 + $0x14] sm:$0xf]
        %v1018 = vld [vmem:[%s328 + $0x18] sm:$0xf]
        %v1019 = vld [vmem:[%s328 + $0x1c] sm:$0xf]
        %v1020 = vld [vmem:[%s328 + $0x20] sm:$0xf]
        %v1021 = vld [vmem:[%s328 + $0x24] sm:$0xf]
        %v1022 = vld [vmem:[%s328 + $0x28] sm:$0xf]
        %v1023 = vld [vmem:[%s328 + $0x2c] sm:$0xf]
        %v1024 = vld [vmem:[%s328 + $0x30] sm:$0xf]
        %v1025 = vld [vmem:[%s328 + $0x34] sm:$0xf]
        %v1026 = vld [vmem:[%s328 + $0x38] sm:$0xf]
        %v1027 = vld [vmem:[%s328 + $0x3c] sm:$0xf]
        %v1028 = vld [vmem:[%s328 + $0x40] sm:$0xf]
        %v1029 = vld [vmem:[%s328 + $0x44] sm:$0xf]
        %v1030 = vld [vmem:[%s328 + $0x48] sm:$0xf]
        %v1031 = vld [vmem:[%s328 + $0x4c] sm:$0xf]
        %v1032 = vld [vmem:[%s328 + $0x50] sm:$0xf]
        %v1033 = vld [vmem:[%s328 + $0x54] sm:$0xf]
        %v1034 = vld [vmem:[%s328 + $0x58] sm:$0xf]
        %v1035 = vld [vmem:[%s328 + $0x5c] sm:$0xf]
        %v1036 = vld [vmem:[%s328 + $0x60] sm:$0xf]
        %v1037 = vld [vmem:[%s328 + $0x64] sm:$0xf]
        %v1038 = vld [vmem:[%s328 + $0x68] sm:$0xf]
        %v1039 = vld [vmem:[%s328 + $0x6c] sm:$0xf]
        %v1040 = vld [vmem:[%s328 + $0x70] sm:$0xf]
        %v1041 = vld [vmem:[%s328 + $0x74] sm:$0xf]
        %v1042 = vld [vmem:[%s328 + $0x78] sm:$0xf]
        %v1043 = vld [vmem:[%s328 + $0x7c] sm:$0xf]
        %v1044 = vld [vmem:[%s328 + $0x80] sm:$0xf]
        %v1045 = vld [vmem:[%s328 + $0x84] sm:$0xf]
        %v1046 = vld [vmem:[%s328 + $0x88] sm:$0xf]
        %v1047 = vld [vmem:[%s328 + $0x8c] sm:$0xf]
        %v1048 = vld [vmem:[%s328 + $0x90] sm:$0xf]
        %v1049 = vld [vmem:[%s328 + $0x94] sm:$0xf]
        %v1050 = vld [vmem:[%s328 + $0x98] sm:$0xf]
        %v1051 = vld [vmem:[%s328 + $0x9c] sm:$0xf]
        %v1052 = vld [vmem:[%s328 + $0xa0] sm:$0xf]
        %v1053 = vld [vmem:[%s328 + $0xa4] sm:$0xf]
        %v1054 = vld [vmem:[%s328 + $0xa8] sm:$0xf]
        %v1055 = vld [vmem:[%s328 + $0xac] sm:$0xf]
        %v1056 = vld [vmem:[%s328 + $0xb0] sm:$0xf]
        %v1057 = vld [vmem:[%s328 + $0xb4] sm:$0xf]
        %v1058 = vld [vmem:[%s328 + $0xb8] sm:$0xf]
        %v1059 = vld [vmem:[%s328 + $0xbc] sm:$0xf]
        %v1060 = vld [vmem:[%s328 + $0xc0] sm:$0xf]
        %v1061 = vld [vmem:[%s328 + $0xc4] sm:$0xf]
        %v1062 = vld [vmem:[%s328 + $0xc8] sm:$0xf]
        %v1063 = vld [vmem:[%s328 + $0xcc] sm:$0xf]
        %v1064 = vld [vmem:[%s328 + $0xd0] sm:$0xf]
        %v1065 = vld [vmem:[%s328 + $0xd4] sm:$0xf]
        %v1066 = vld [vmem:[%s328 + $0xd8] sm:$0xf]
        %v1067 = vld [vmem:[%s328 + $0xdc] sm:$0xf]
        %v1068 = vld [vmem:[%s328 + $0xe0] sm:$0xf]
        %v1069 = vld [vmem:[%s328 + $0xe4] sm:$0xf]
        %v1070 = vld [vmem:[%s328 + $0xe8] sm:$0xf]
        %v1071 = vld [vmem:[%s328 + $0xec] sm:$0xf]
        %v1072 = vld [vmem:[%s328 + $0xf0] sm:$0xf]
        %v1073 = vld [vmem:[%s328 + $0xf4] sm:$0xf]
        %v1074 = vld [vmem:[%s328 + $0xf8] sm:$0xf]
        %v1075 = vld [vmem:[%s328 + $0xfc] sm:$0xf]
        %v1140 = vunpack.c.l.b16 %v1012
        %v1141 = vunpack.c.l.b16 %v1013
        %v1142 = vunpack.c.l.b16 %v1014
        %v1143 = vunpack.c.l.b16 %v1015
        %v1144 = vunpack.c.l.b16 %v1016
        %v1145 = vunpack.c.l.b16 %v1017
        %v1146 = vunpack.c.l.b16 %v1018
        %v1147 = vunpack.c.l.b16 %v1019
        %v1148 = vunpack.c.l.b16 %v1020
        %v1149 = vunpack.c.l.b16 %v1021
        %v1150 = vunpack.c.l.b16 %v1022
        %v1151 = vunpack.c.l.b16 %v1023
        %v1152 = vunpack.c.l.b16 %v1024
        %v1153 = vunpack.c.l.b16 %v1025
        %v1154 = vunpack.c.l.b16 %v1026
        %v1155 = vunpack.c.l.b16 %v1027
        %v1156 = vunpack.c.l.b16 %v1028
        %v1157 = vunpack.c.l.b16 %v1029
        %v1158 = vunpack.c.l.b16 %v1030
        %v1159 = vunpack.c.l.b16 %v1031
        %v1160 = vunpack.c.l.b16 %v1032
        %v1161 = vunpack.c.l.b16 %v1033
        %v1162 = vunpack.c.l.b16 %v1034
        %v1163 = vunpack.c.l.b16 %v1035
        %v1164 = vunpack.c.l.b16 %v1036
        %v1165 = vunpack.c.l.b16 %v1037
        %v1166 = vunpack.c.l.b16 %v1038
        %v1167 = vunpack.c.l.b16 %v1039
        %v1168 = vunpack.c.l.b16 %v1040
        %v1169 = vunpack.c.l.b16 %v1041
        %v1170 = vunpack.c.l.b16 %v1042
        %v1171 = vunpack.c.l.b16 %v1043
        %v1172 = vunpack.c.l.b16 %v1044
        %v1173 = vunpack.c.l.b16 %v1045
        %v1174 = vunpack.c.l.b16 %v1046
        %v1175 = vunpack.c.l.b16 %v1047
        %v1176 = vunpack.c.l.b16 %v1048
        %v1177 = vunpack.c.l.b16 %v1049
        %v1178 = vunpack.c.l.b16 %v1050
        %v1179 = vunpack.c.l.b16 %v1051
        %v1180 = vunpack.c.l.b16 %v1052
        %v1181 = vunpack.c.l.b16 %v1053
        %v1182 = vunpack.c.l.b16 %v1054
        %v1183 = vunpack.c.l.b16 %v1055
        %v1184 = vunpack.c.l.b16 %v1056
        %v1185 = vunpack.c.l.b16 %v1057
        %v1186 = vunpack.c.l.b16 %v1058
        %v1187 = vunpack.c.l.b16 %v1059
        %v1188 = vunpack.c.l.b16 %v1060
        %v1189 = vunpack.c.l.b16 %v1061
        %v1190 = vunpack.c.l.b16 %v1062
        %v1191 = vunpack.c.l.b16 %v1063
        %v1192 = vunpack.c.l.b16 %v1064
        %v1193 = vunpack.c.l.b16 %v1065
        %v1194 = vunpack.c.l.b16 %v1066
        %v1195 = vunpack.c.l.b16 %v1067
        %v1196 = vunpack.c.l.b16 %v1068
        %v1197 = vunpack.c.l.b16 %v1069
        %v1198 = vunpack.c.l.b16 %v1070
        %v1199 = vunpack.c.l.b16 %v1071
        %v1200 = vunpack.c.l.b16 %v1072
        %v1201 = vunpack.c.l.b16 %v1073
        %v1202 = vunpack.c.l.b16 %v1074
        %v1203 = vunpack.c.l.b16 %v1075
        %v1204 = vpack.c.b16 %v1141, %v1140
        %v1205 = vpack.c.b16 %v1143, %v1142
        %v1206 = vpack.c.b16 %v1145, %v1144
        %v1207 = vpack.c.b16 %v1147, %v1146
        %v1208 = vpack.c.b16 %v1149, %v1148
        %v1209 = vpack.c.b16 %v1151, %v1150
        %v1210 = vpack.c.b16 %v1153, %v1152
        %v1211 = vpack.c.b16 %v1155, %v1154
        %v1212 = vpack.c.b16 %v1157, %v1156
        %v1213 = vpack.c.b16 %v1159, %v1158
        %v1214 = vpack.c.b16 %v1161, %v1160
        %v1215 = vpack.c.b16 %v1163, %v1162
        %v1216 = vpack.c.b16 %v1165, %v1164
        %v1217 = vpack.c.b16 %v1167, %v1166
        %v1218 = vpack.c.b16 %v1169, %v1168
        %v1219 = vpack.c.b16 %v1171, %v1170
        %v1220 = vpack.c.b16 %v1173, %v1172
        %v1221 = vpack.c.b16 %v1175, %v1174
        %v1222 = vpack.c.b16 %v1177, %v1176
        %v1223 = vpack.c.b16 %v1179, %v1178
        %v1224 = vpack.c.b16 %v1181, %v1180
        %v1225 = vpack.c.b16 %v1183, %v1182
        %v1226 = vpack.c.b16 %v1185, %v1184
        %v1227 = vpack.c.b16 %v1187, %v1186
        %v1228 = vpack.c.b16 %v1189, %v1188
        %v1229 = vpack.c.b16 %v1191, %v1190
        %v1230 = vpack.c.b16 %v1193, %v1192
        %v1231 = vpack.c.b16 %v1195, %v1194
        %v1232 = vpack.c.b16 %v1197, %v1196
        %v1233 = vpack.c.b16 %v1199, %v1198
        %v1234 = vpack.c.b16 %v1201, %v1200
        %v1235 = vpack.c.b16 %v1203, %v1202
        %1268 = vmatprep.subr.bf16.mxu0 0
        %1269 = vmatpush1.bf16.msra.mxu0 %v1204
        %1270 = vmatprep.subr.bf16.mxu0 0
        %1271 = vmatpush1.bf16.msra.mxu0 %v1205
        %1272 = vmatprep.subr.bf16.mxu0 0
        %1273 = vmatpush1.bf16.msra.mxu0 %v1206
        %1274 = vmatprep.subr.bf16.mxu0 0
        %1275 = vmatpush1.bf16.msra.mxu0 %v1207
        %1276 = vmatprep.subr.bf16.mxu0 0
        %1277 = vmatpush1.bf16.msra.mxu0 %v1208
        %1278 = vmatprep.subr.bf16.mxu0 0
        %1279 = vmatpush1.bf16.msra.mxu0 %v1209
        %1280 = vmatprep.subr.bf16.mxu0 0
        %1281 = vmatpush1.bf16.msra.mxu0 %v1210
        %1282 = vmatprep.subr.bf16.mxu0 0
        %1283 = vmatpush1.bf16.msra.mxu0 %v1211
        %1284 = vmatprep.subr.bf16.mxu0 0
        %1285 = vmatpush1.bf16.msra.mxu0 %v1212
        %1286 = vmatprep.subr.bf16.mxu0 0
        %1287 = vmatpush1.bf16.msra.mxu0 %v1213
        %1288 = vmatprep.subr.bf16.mxu0 0
        %1289 = vmatpush1.bf16.msra.mxu0 %v1214
        %1290 = vmatprep.subr.bf16.mxu0 0
        %1291 = vmatpush1.bf16.msra.mxu0 %v1215
        %1292 = vmatprep.subr.bf16.mxu0 0
        %1293 = vmatpush1.bf16.msra.mxu0 %v1216
        %1294 = vmatprep.subr.bf16.mxu0 0
        %1295 = vmatpush1.bf16.msra.mxu0 %v1217
        %1296 = vmatprep.subr.bf16.mxu0 0
        %1297 = vmatpush1.bf16.msra.mxu0 %v1218
        %1298 = vmatprep.subr.bf16.mxu0 0
        %1299 = vmatpush1.bf16.msra.mxu0 %v1219
        %1300 = vmatprep.mubr.bf16.mxu0 %v981
        %1301 = vmatmul.mubr.bf16.gmra.mrb[0].mxu0 %v980
        %v1302 = vpop.f32.mrb[0].mxu0
        %v1303 = vadd.f32 0.0, %v1302
        %v1304 = vpop.f32.mrb[0].mxu0
        %v1305 = vpop.f32.mrb[0].mxu0
        %v1306 = vadd.f32 0.0, %v1305
        %v1307 = vpop.f32.mrb[0].mxu0
        %1308 = vmatprep.mubr.bf16.mxu0 %v985
        %1309 = vmatmul.mubr.bf16.gmra.mrb[0].mxu0 %v984
        %v1310 = vpop.f32.mrb[0].mxu0
        %v1311 = vadd.f32 0.0, %v1310
        %v1312 = vpop.f32.mrb[0].mxu0
        %v1313 = vpop.f32.mrb[0].mxu0
        %v1314 = vadd.f32 0.0, %v1313
        %v1315 = vpop.f32.mrb[0].mxu0
        %1316 = vmatprep.mubr.bf16.mxu0 %v989
        %1317 = vmatmul.mubr.bf16.gmra.mrb[0].mxu0 %v988
        %v1318 = vpop.f32.mrb[0].mxu0
        %v1319 = vadd.f32 0.0, %v1318
        %v1320 = vpop.f32.mrb[0].mxu0
        %v1321 = vpop.f32.mrb[0].mxu0
        %v1322 = vadd.f32 0.0, %v1321
        %v1323 = vpop.f32.mrb[0].mxu0
        %1324 = vmatprep.mubr.bf16.mxu0 %v993
        %1325 = vmatmul.mubr.bf16.gmra.mrb[0].mxu0 %v992
        %v1326 = vpop.f32.mrb[0].mxu0
        %v1327 = vadd.f32 0.0, %v1326
        %v1328 = vpop.f32.mrb[0].mxu0
        %v1329 = vpop.f32.mrb[0].mxu0
        %v1330 = vadd.f32 0.0, %v1329
        %v1331 = vpop.f32.mrb[0].mxu0
        %1332 = vmatprep.mubr.bf16.mxu0 %v997
        %1333 = vmatmul.mubr.bf16.gmra.mrb[0].mxu0 %v996
        %v1334 = vpop.f32.mrb[0].mxu0
        %v1335 = vadd.f32 0.0, %v1334
        %v1336 = vpop.f32.mrb[0].mxu0
        %v1337 = vpop.f32.mrb[0].mxu0
        %v1338 = vadd.f32 0.0, %v1337
        %v1339 = vpop.f32.mrb[0].mxu0
        %1340 = vmatprep.mubr.bf16.mxu0 %v1001
        %1341 = vmatmul.mubr.bf16.gmra.mrb[0].mxu0 %v1000
        %v1342 = vpop.f32.mrb[0].mxu0
        %v1343 = vadd.f32 0.0, %v1342
        %v1344 = vpop.f32.mrb[0].mxu0
        %v1345 = vpop.f32.mrb[0].mxu0
        %v1346 = vadd.f32 0.0, %v1345
        %v1347 = vpop.f32.mrb[0].mxu0
        %1348 = vmatprep.mubr.bf16.mxu0 %v1005
        %1349 = vmatmul.mubr.bf16.gmra.mrb[0].mxu0 %v1004
        %v1350 = vpop.f32.mrb[0].mxu0
        %v1351 = vadd.f32 0.0, %v1350
        %v1352 = vpop.f32.mrb[0].mxu0
        %v1353 = vpop.f32.mrb[0].mxu0
        %v1354 = vadd.f32 0.0, %v1353
        %v1355 = vpop.f32.mrb[0].mxu0
        %1356 = vmatprep.mubr.bf16.mxu0 %v1009
        %1357 = vmatmul.mubr.bf16.gmra.mrb[0].mxu0 %v1008
        %v1358 = vpop.f32.mrb[0].mxu0
        %v1359 = vadd.f32 0.0, %v1358
        %v1360 = vpop.f32.mrb[0].mxu0
        %v1361 = vpop.f32.mrb[0].mxu0
        %v1362 = vadd.f32 0.0, %v1361
        %v1363 = vpop.f32.mrb[0].mxu0
        %1364 = vdwg.mxu0
        %1365 = vmatprep.subr.bf16.mxu0 0
        %1366 = vmatpush1.bf16.msra.mxu0 %v1220
        %1367 = vmatprep.subr.bf16.mxu0 0
        %1368 = vmatpush1.bf16.msra.mxu0 %v1221
        %1369 = vmatprep.subr.bf16.mxu0 0
        %1370 = vmatpush1.bf16.msra.mxu0 %v1222
        %1371 = vmatprep.subr.bf16.mxu0 0
        %1372 = vmatpush1.bf16.msra.mxu0 %v1223
        %1373 = vmatprep.subr.bf16.mxu0 0
        %1374 = vmatpush1.bf16.msra.mxu0 %v1224
        %1375 = vmatprep.subr.bf16.mxu0 0
        %1376 = vmatpush1.bf16.msra.mxu0 %v1225
        %1377 = vmatprep.subr.bf16.mxu0 0
        %1378 = vmatpush1.bf16.msra.mxu0 %v1226
        %1379 = vmatprep.subr.bf16.mxu0 0
        %1380 = vmatpush1.bf16.msra.mxu0 %v1227
        %1381 = vmatprep.subr.bf16.mxu0 0
        %1382 = vmatpush1.bf16.msra.mxu0 %v1228
        %1383 = vmatprep.subr.bf16.mxu0 0
        %1384 = vmatpush1.bf16.msra.mxu0 %v1229
        %1385 = vmatprep.subr.bf16.mxu0 0
        %1386 = vmatpush1.bf16.msra.mxu0 %v1230
        %1387 = vmatprep.subr.bf16.mxu0 0
        %1388 = vmatpush1.bf16.msra.mxu0 %v1231
        %1389 = vmatprep.subr.bf16.mxu0 0
        %1390 = vmatpush1.bf16.msra.mxu0 %v1232
        %1391 = vmatprep.subr.bf16.mxu0 0
        %1392 = vmatpush1.bf16.msra.mxu0 %v1233
        %1393 = vmatprep.subr.bf16.mxu0 0
        %1394 = vmatpush1.bf16.msra.mxu0 %v1234
        %1395 = vmatprep.subr.bf16.mxu0 0
        %1396 = vmatpush1.bf16.msra.mxu0 %v1235
        %1397 = vmatprep.mubr.bf16.mxu0 %v983
        %1398 = vmatmul.mubr.bf16.gmra.mrb[0].mxu0 %v982
        %v1399 = vpop.f32.mrb[0].mxu0
        %v1400 = vadd.f32 %v1303, %v1399
        %v1401 = vpop.f32.mrb[0].mxu0
        %v1402 = vpop.f32.mrb[0].mxu0
        %v1403 = vadd.f32 %v1306, %v1402
        %v1404 = vpop.f32.mrb[0].mxu0
        %1405 = vmatprep.mubr.bf16.mxu0 %v987
        %1406 = vmatmul.mubr.bf16.gmra.mrb[0].mxu0 %v986
        %v1407 = vpop.f32.mrb[0].mxu0
        %v1408 = vadd.f32 %v1311, %v1407
        %v1409 = vpop.f32.mrb[0].mxu0
        %v1410 = vpop.f32.mrb[0].mxu0
        %v1411 = vadd.f32 %v1314, %v1410
        %v1412 = vpop.f32.mrb[0].mxu0
        %1413 = vmatprep.mubr.bf16.mxu0 %v991
        %1414 = vmatmul.mubr.bf16.gmra.mrb[0].mxu0 %v990
        %v1415 = vpop.f32.mrb[0].mxu0
        %v1416 = vadd.f32 %v1319, %v1415
        %v1417 = vpop.f32.mrb[0].mxu0
        %v1418 = vpop.f32.mrb[0].mxu0
        %v1419 = vadd.f32 %v1322, %v1418
        %v1420 = vpop.f32.mrb[0].mxu0
        %1421 = vmatprep.mubr.bf16.mxu0 %v995
        %1422 = vmatmul.mubr.bf16.gmra.mrb[0].mxu0 %v994
        %v1423 = vpop.f32.mrb[0].mxu0
        %v1424 = vadd.f32 %v1327, %v1423
        %v1425 = vpop.f32.mrb[0].mxu0
        %v1426 = vpop.f32.mrb[0].mxu0
        %v1427 = vadd.f32 %v1330, %v1426
        %v1428 = vpop.f32.mrb[0].mxu0
        %1429 = vmatprep.mubr.bf16.mxu0 %v999
        %1430 = vmatmul.mubr.bf16.gmra.mrb[0].mxu0 %v998
        %v1431 = vpop.f32.mrb[0].mxu0
        %v1432 = vadd.f32 %v1335, %v1431
        %v1433 = vpop.f32.mrb[0].mxu0
        %v1434 = vpop.f32.mrb[0].mxu0
        %v1435 = vadd.f32 %v1338, %v1434
        %v1436 = vpop.f32.mrb[0].mxu0
        %1437 = vmatprep.mubr.bf16.mxu0 %v1003
        %1438 = vmatmul.mubr.bf16.gmra.mrb[0].mxu0 %v1002
        %v1439 = vpop.f32.mrb[0].mxu0
        %v1440 = vadd.f32 %v1343, %v1439
        %v1441 = vpop.f32.mrb[0].mxu0
        %v1442 = vpop.f32.mrb[0].mxu0
        %v1443 = vadd.f32 %v1346, %v1442
        %v1444 = vpop.f32.mrb[0].mxu0
        %1445 = vmatprep.mubr.bf16.mxu0 %v1007
        %1446 = vmatmul.mubr.bf16.gmra.mrb[0].mxu0 %v1006
        %v1447 = vpop.f32.mrb[0].mxu0
        %v1448 = vadd.f32 %v1351, %v1447
        %v1449 = vpop.f32.mrb[0].mxu0
        %v1450 = vpop.f32.mrb[0].mxu0
        %v1451 = vadd.f32 %v1354, %v1450
        %v1452 = vpop.f32.mrb[0].mxu0
        %1453 = vmatprep.mubr.bf16.mxu0 %v1011
        %1454 = vmatmul.mubr.bf16.gmra.mrb[0].mxu0 %v1010
        %v1455 = vpop.f32.mrb[0].mxu0
        %v1456 = vadd.f32 %v1359, %v1455
        %v1457 = vpop.f32.mrb[0].mxu0
        %v1458 = vpop.f32.mrb[0].mxu0
        %v1459 = vadd.f32 %v1362, %v1458
        %v1460 = vpop.f32.mrb[0].mxu0
        %1461 = vdwg.mxu0
        %v1462 = vadd.f32 %v964, %v1400
        %v1463 = vadd.f32 %v965, %v1403
        %v1464 = vadd.f32 %v966, %v1408
        %v1465 = vadd.f32 %v967, %v1411
        %v1466 = vadd.f32 %v968, %v1416
        %v1467 = vadd.f32 %v969, %v1419
        %v1468 = vadd.f32 %v970, %v1424
        %v1469 = vadd.f32 %v971, %v1427
        %v1470 = vadd.f32 %v972, %v1432
        %v1471 = vadd.f32 %v973, %v1435
        %v1472 = vadd.f32 %v974, %v1440
        %v1473 = vadd.f32 %v975, %v1443
        %v1474 = vadd.f32 %v976, %v1448
        %v1475 = vadd.f32 %v977, %v1451
        %v1476 = vadd.f32 %v978, %v1456
        %v1477 = vadd.f32 %v979, %v1459
        %1478 = vst [vmem:[#allocation2] sm:$0xff] %v1462
        %1479 = vst [vmem:[#allocation2 + $0x8] sm:$0xff] %v1463
        %1480 = vst [vmem:[#allocation2 + $0x10] sm:$0xff] %v1464
        %1481 = vst [vmem:[#allocation2 + $0x18] sm:$0xff] %v1465
        %1482 = vst [vmem:[#allocation2 + $0x20] sm:$0xff] %v1466
        %1483 = vst [vmem:[#allocation2 + $0x28] sm:$0xff] %v1467
        %1484 = vst [vmem:[#allocation2 + $0x30] sm:$0xff] %v1468
        %1485 = vst [vmem:[#allocation2 + $0x38] sm:$0xff] %v1469
        %1486 = vst [vmem:[#allocation2 + $0x40] sm:$0xff] %v1470
        %1487 = vst [vmem:[#allocation2 + $0x48] sm:$0xff] %v1471
        %1488 = vst [vmem:[#allocation2 + $0x50] sm:$0xff] %v1472
        %1489 = vst [vmem:[#allocation2 + $0x58] sm:$0xff] %v1473
        %1490 = vst [vmem:[#allocation2 + $0x60] sm:$0xff] %v1474
        %1491 = vst [vmem:[#allocation2 + $0x68] sm:$0xff] %v1475
        %1492 = vst [vmem:[#allocation2 + $0x70] sm:$0xff] %v1476
        %1493 = vst [vmem:[#allocation2 + $0x78] sm:$0xff] %v1477
        %p1494 = scmp.eq.s32.totalorder %s33, 1
        // Predicated region
        $region61: #{tpu_custom_call.1} parent=39 // pred_check
          %p1495 = pneg %p1494
        $region62: #{tpu_custom_call.1} parent=39 // pred_check_branch
          %1497 = sbr.rel (%p1495) target = $region64
        $region63: #{tpu_custom_call.1} parent=39 // pred_region
          %v1498 = vld [vmem:[#allocation2] sm:$0xff]
          %v1499 = vld [vmem:[#allocation2 + $0x8] sm:$0xff]
          %v1500 = vld [vmem:[#allocation2 + $0x10] sm:$0xff]
          %v1501 = vld [vmem:[#allocation2 + $0x18] sm:$0xff]
          %v1502 = vld [vmem:[#allocation2 + $0x20] sm:$0xff]
          %v1503 = vld [vmem:[#allocation2 + $0x28] sm:$0xff]
          %v1504 = vld [vmem:[#allocation2 + $0x30] sm:$0xff]
          %v1505 = vld [vmem:[#allocation2 + $0x38] sm:$0xff]
          %v1506 = vld [vmem:[#allocation2 + $0x40] sm:$0xff]
          %v1507 = vld [vmem:[#allocation2 + $0x48] sm:$0xff]
          %v1508 = vld [vmem:[#allocation2 + $0x50] sm:$0xff]
          %v1509 = vld [vmem:[#allocation2 + $0x58] sm:$0xff]
          %v1510 = vld [vmem:[#allocation2 + $0x60] sm:$0xff]
          %v1511 = vld [vmem:[#allocation2 + $0x68] sm:$0xff]
          %v1512 = vld [vmem:[#allocation2 + $0x70] sm:$0xff]
          %v1513 = vld [vmem:[#allocation2 + $0x78] sm:$0xff]
          %v1514 = vld [vmem:[%s4] sm:$0x1]
          %v1516 = vlaneseq
          %v1517 = vshrl.u32 %v1516, 7
          %v1518 = vsub.s32 0, %v1517
          %v1519 = vrot.slane %v1514, %v1518
          %v1521 = vadd.f32 %v1498, %v1519
          %v1522 = vadd.f32 %v1499, %v1519
          %v1523 = vadd.f32 %v1500, %v1519
          %v1524 = vadd.f32 %v1501, %v1519
          %v1525 = vadd.f32 %v1502, %v1519
          %v1526 = vadd.f32 %v1503, %v1519
          %v1527 = vadd.f32 %v1504, %v1519
          %v1528 = vadd.f32 %v1505, %v1519
          %v1529 = vadd.f32 %v1506, %v1519
          %v1530 = vadd.f32 %v1507, %v1519
          %v1531 = vadd.f32 %v1508, %v1519
          %v1532 = vadd.f32 %v1509, %v1519
          %v1533 = vadd.f32 %v1510, %v1519
          %v1534 = vadd.f32 %v1511, %v1519
          %v1535 = vadd.f32 %v1512, %v1519
          %v1536 = vadd.f32 %v1513, %v1519
          %v1537 = vpack.c.bf16 %v1522, %v1521
          %v1538 = vpack.c.bf16 %v1524, %v1523
          %v1539 = vpack.c.bf16 %v1526, %v1525
          %v1540 = vpack.c.bf16 %v1528, %v1527
          %v1541 = vpack.c.bf16 %v1530, %v1529
          %v1542 = vpack.c.bf16 %v1532, %v1531
          %v1543 = vpack.c.bf16 %v1534, %v1533
          %v1544 = vpack.c.bf16 %v1536, %v1535
          %v1553 = vunpack.c.l.b16 %v1537
          %v1554 = vunpack.c.h.b16 %v1537
          %v1555 = vunpack.c.l.b16 %v1538
          %v1556 = vunpack.c.h.b16 %v1538
          %v1557 = vunpack.c.l.b16 %v1539
          %v1558 = vunpack.c.h.b16 %v1539
          %v1559 = vunpack.c.l.b16 %v1540
          %v1560 = vunpack.c.h.b16 %v1540
          %v1561 = vunpack.c.l.b16 %v1541
          %v1562 = vunpack.c.h.b16 %v1541
          %v1563 = vunpack.c.l.b16 %v1542
          %v1564 = vunpack.c.h.b16 %v1542
          %v1565 = vunpack.c.l.b16 %v1543
          %v1566 = vunpack.c.h.b16 %v1543
          %v1567 = vunpack.c.l.b16 %v1544
          %v1568 = vunpack.c.h.b16 %v1544
          %v1569 = vpack.c.b16 %v1553, %v1553
          %v1570 = vpack.c.b16 %v1554, %v1554
          %v1571 = vpack.c.b16 %v1555, %v1555
          %v1572 = vpack.c.b16 %v1556, %v1556
          %v1573 = vpack.c.b16 %v1557, %v1557
          %v1574 = vpack.c.b16 %v1558, %v1558
          %v1575 = vpack.c.b16 %v1559, %v1559
          %v1576 = vpack.c.b16 %v1560, %v1560
          %v1577 = vpack.c.b16 %v1561, %v1561
          %v1578 = vpack.c.b16 %v1562, %v1562
          %v1579 = vpack.c.b16 %v1563, %v1563
          %v1580 = vpack.c.b16 %v1564, %v1564
          %v1581 = vpack.c.b16 %v1565, %v1565
          %v1582 = vpack.c.b16 %v1566, %v1566
          %v1583 = vpack.c.b16 %v1567, %v1567
          %v1584 = vpack.c.b16 %v1568, %v1568
          %1601 = vst [vmem:[%s369] sm:$0xf] %v1569
          %1602 = vst [vmem:[%s369 + $0x4] sm:$0xf] %v1570
          %1603 = vst [vmem:[%s369 + $0x8] sm:$0xf] %v1571
          %1604 = vst [vmem:[%s369 + $0xc] sm:$0xf] %v1572
          %1605 = vst [vmem:[%s369 + $0x10] sm:$0xf] %v1573
          %1606 = vst [vmem:[%s369 + $0x14] sm:$0xf] %v1574
          %1607 = vst [vmem:[%s369 + $0x18] sm:$0xf] %v1575
          %1608 = vst [vmem:[%s369 + $0x1c] sm:$0xf] %v1576
          %1609 = vst [vmem:[%s369 + $0x20] sm:$0xf] %v1577
          %1610 = vst [vmem:[%s369 + $0x24] sm:$0xf] %v1578
          %1611 = vst [vmem:[%s369 + $0x28] sm:$0xf] %v1579
          %1612 = vst [vmem:[%s369 + $0x2c] sm:$0xf] %v1580
          %1613 = vst [vmem:[%s369 + $0x30] sm:$0xf] %v1581
          %1614 = vst [vmem:[%s369 + $0x34] sm:$0xf] %v1582
          %1615 = vst [vmem:[%s369 + $0x38] sm:$0xf] %v1583
          %1616 = vst [vmem:[%s369 + $0x3c] sm:$0xf] %v1584
        $region64: #{tpu_custom_call.1} parent=39 // pred_fallthru
          _
        %s1617 = sand.u32 %s173, 1
        %s1618 = scalar_lea.sflag [#allocation5], %s1617
        %s1619 = sand.u32 %s173, 1
        %s1620 = smul.addr %s1619, 64
        %s1621 = scalar_lea.vmem [#allocation11], %s1620
        // Predicated region
        $region65: #{tpu_custom_call.1} parent=39 // pred_check
          %p1622 = pneg %p183
        $region66: #{tpu_custom_call.1} parent=39 // pred_check_branch
          %1624 = sbr.rel (%p1622) target = $region68
        $region67: #{tpu_custom_call.1} parent=39 // pred_region
          %s1625 = smul.u32 16, %s32
          %s1627 = ssub.s32 1024, 1024
          %1628 = vsyncadd %s1618, %s1627
          %s1629 = smul.addr %s1625, 64
          %s1630 = scalar_lea.hbm %s5, %s1629
          %s1631 = sshll.u32 %s1621, 4
          %s1632 = int_to_ptr.vmem [resolvable:$true] %s1631
          %1637 = dma.vmem_to_hbm [thread:$0]  %s1632, 1024, %s1630, %s1618, 64, 64, 4
        $region68: #{tpu_custom_call.1} parent=39 // pred_fallthru
          _
      $region40: #{tpu_custom_call.1} parent=5 // pred_fallthru
        _
      %p1638 = scmp.le.s32.totalorder 2, %s23
      // Predicated region
      $region69: #{tpu_custom_call.1} parent=5 // pred_check
        %p1639 = pneg %p1638
      $region70: #{tpu_custom_call.1} parent=5 // pred_check_branch
        %1641 = sbr.rel (%p1639) target = $region72
      $region71: #{tpu_custom_call.1} parent=5 // pred_region
        %s1642 = ssub.s32 %s23, 2
        // Predicated region
        $region73: #{tpu_custom_call.1} parent=71 // pred_check
          %p1643 = pneg %p189
        $region74: #{tpu_custom_call.1} parent=71 // pred_check_branch
          %1645 = sbr.rel (%p1643) target = $region76
        $region75: #{tpu_custom_call.1} parent=71 // pred_region
          %s1646 = sand.u32 %s174, 1
          %s1647 = scalar_lea.sflag [#allocation5], %s1646
          %s1648 = sand.u32 %s174, 1
          %s1649 = smul.addr %s1648, 64
          %s1650 = scalar_lea.vmem [#allocation11], %s1649
          %1651 = dma.done %s1647, 1024
        $region76: #{tpu_custom_call.1} parent=71 // pred_fallthru
          _
      $region72: #{tpu_custom_call.1} parent=5 // pred_fallthru
        _
    $region6: #{tpu_custom_call.1} parent=1 // loop_footer
      %s27 = sadd.s32 1, %s23
    $region7: #{tpu_custom_call.1} parent=1 // loop_footer_branch
      %22 = sbr.rel target = $region3
    $region8: #{tpu_custom_call.1} parent=1 // loop_exit
      _
    %1652 = vsyncpa [#allocation4], 1
    %s1653 = scalar_lea.sflag [#allocation4], 1
    %1654 = vsyncpa %s1653, 1
    %1655 = vsyncpa [#allocation7], 1
    %s1656 = scalar_lea.sflag [#allocation7], 1
    %1657 = vsyncpa %s1656, 1
    %1658 = vsyncpa [#allocation10], 1
    %s1659 = scalar_lea.sflag [#allocation10], 1
    %1660 = vsyncpa %s1659, 1
    %1661 = vsyncpa [#allocation5], 1
    %s1662 = scalar_lea.sflag [#allocation5], 1
    %1663 = vsyncpa %s1662, 1

</llo_original>
